<compile_context>
chip_gen: v6e
topology: v6e:2x2x1
jax: 0.10.0
libtpu: 0.0.40
codegen_flags: <defaults>
</compile_context>

<pallas_src>
import functools

import numpy as np
import jax
import jax.numpy as jnp
from jax.experimental import pallas as pl
from jax.experimental.pallas import tpu as pltpu

LANE = 128


def _round_up(n, m):
    return ((n + m - 1) // m) * m


def _vmem():
    return pl.BlockSpec(memory_space=pltpu.MemorySpace.VMEM)


# ----------------------------------------------------------------------------
# Pallas kernels
# ----------------------------------------------------------------------------
def conv_pool_relu_kernel(p0_ref, p1_ref, p2_ref, p3_ref, w_ref, b_ref, o_ref):
    """Fused conv (as im2col matmul) + max_pool2d(2) + relu.

    p{0..3}: (M, Kpad) patch matrices, one per 2x2-pool offset, rows ordered
             (n, pooled_h, pooled_w).  w: (Kpad, 128) combined+padded weights.
    Pool(2x2) == elementwise max of the four per-offset conv results.
    """
    w = w_ref[...]
    y = jnp.dot(p0_ref[...], w, preferred_element_type=jnp.float32)
    y = jnp.maximum(y, jnp.dot(p1_ref[...], w, preferred_element_type=jnp.float32))
    y = jnp.maximum(y, jnp.dot(p2_ref[...], w, preferred_element_type=jnp.float32))
    y = jnp.maximum(y, jnp.dot(p3_ref[...], w, preferred_element_type=jnp.float32))
    o_ref[...] = jnp.maximum(y + b_ref[...], 0.0).astype(o_ref.dtype)


def fc_stack_kernel(x_ref, w1_ref, b1_ref, w2_ref, b2_ref, o_ref, *, out_dim):
    """Fused fc1 + relu + (dropout=identity) + fc2 + log_softmax."""
    h = jnp.dot(x_ref[...], w1_ref[...], preferred_element_type=jnp.float32) + b1_ref[...]
    h = jnp.maximum(h, 0.0)
    # TODO(synk): F.dropout between fc1 and fc2 is identity (inference semantics).
    y = jnp.dot(h, w2_ref[...], preferred_element_type=jnp.float32) + b2_ref[...]
    # Mask the zero-padded output lanes before log_softmax.
    cols = jax.lax.broadcasted_iota(jnp.int32, y.shape, 1)
    y = jnp.where(cols < out_dim, y, jnp.float32(-1e30))
    m = jnp.max(y, axis=-1, keepdims=True)
    s = y - m
    lse = jnp.log(jnp.sum(jnp.exp(s), axis=-1, keepdims=True))
    o_ref[...] = (s - lse).astype(o_ref.dtype)


# ----------------------------------------------------------------------------
# Wrappers
# ----------------------------------------------------------------------------
def conv_pool_relu(x_nhwc, w_comb, b_comb, K):
    """relu(max_pool2d(conv(x), 2)) with pre-combined, lane-padded weights.

    x_nhwc: (N, H, W, Cin).  w_comb: (Kpad, 128), Kpad >= K*K*Cin, rows ordered
    (kh, kw, ci).  Returns ((N*POH*POW, 128) lane-dense output, POH, POW).
    """
    N, H, W, C = x_nhwc.shape
    OH, OW = H - K + 1, W - K + 1
    POH, POW = OH // 2, OW // 2
    Kfull = K * K * C
    Kpad = w_comb.shape[0]

    # Four stride-2 im2col patch matrices, one per pooling-window offset.
    mats = []
    for dh in range(2):
        for dw in range(2):
            cols = [x_nhwc[:, dh + kh: dh + kh + 2 * POH: 2,
                           dw + kw: dw + kw + 2 * POW: 2, :]
                    for kh in range(K) for kw in range(K)]
            p = jnp.concatenate(cols, axis=-1).reshape(N * POH * POW, Kfull)
            if Kpad > Kfull:
                p = jnp.pad(p, ((0, 0), (0, Kpad - Kfull)))
            mats.append(p)

    M = N * POH * POW
    out = pl.pallas_call(
        conv_pool_relu_kernel,
        out_shape=jax.ShapeDtypeStruct((M, LANE), jnp.float32),
        in_specs=[_vmem()] * 6,
        out_specs=_vmem(),
    )(*mats, w_comb, b_comb)
    return out, POH, POW


def _combine(pa, pb, a):
    return (1.0 - a) * pa + a * pb


def prep_conv_params(wa, ba, wb, bb, a):
    """Combine server/client conv params; reshape to (K*K*Cin, Cout); pad to (Kpad, 128)."""
    Cout, Cin, K, _ = wa.shape
    w = _combine(wa, wb, a)                                     # (Cout, Cin, K, K)
    b = _combine(ba, bb, a)                                     # (Cout,)
    w = w.transpose(2, 3, 1, 0).reshape(K * K * Cin, Cout)      # rows: (kh, kw, ci)
    kpad = _round_up(K * K * Cin, 8)
    w = jnp.pad(w, ((0, kpad - K * K * Cin), (0, LANE - Cout)))
    b = jnp.pad(b.reshape(1, Cout), ((0, 0), (0, LANE - Cout)))
    return w, b, K, Cout


def prep_fc_params(sp, cp, a, pooled_hw, conv2_cout):
    """Combine fc params, permute fc1 input columns from NCHW- to NHWC-flatten order, pad."""
    ph, pw = pooled_hw
    c = conv2_cout
    # NHWC flatten column (h, w, ci)  <-  torch NCHW flatten column ci*ph*pw + h*pw + w
    perm = np.array([ci * ph * pw + h * pw + w
                     for h in range(ph) for w in range(pw) for ci in range(c)],
                    dtype=np.int32)
    w1 = _combine(sp['fc1_w'], cp['fc1_w'], a)[:, perm].T       # (320, 100)
    b1 = _combine(sp['fc1_b'], cp['fc1_b'], a).reshape(1, -1)   # (1, 100)
    w2 = _combine(sp['fc2_w'], cp['fc2_w'], a).T                # (100, out)
    b2 = _combine(sp['fc2_b'], cp['fc2_b'], a).reshape(1, -1)   # (1, out)

    w1 = jnp.pad(w1, ((0, 0), (0, LANE - w1.shape[1])))                      # (320, 128)
    b1 = jnp.pad(b1, ((0, 0), (0, LANE - b1.shape[1])))                      # (1, 128)
    w2 = jnp.pad(w2, ((0, LANE - w2.shape[0]), (0, LANE - w2.shape[1])))     # (128, 128)
    b2 = jnp.pad(b2, ((0, 0), (0, LANE - b2.shape[1])))                      # (1, 128)
    return w1, b1, w2, b2


def net3_forward(x_nchw, server_p, client_p, alphas, out_dim=10):
    """Pallas implementation of Net3.forward (dataset='MNIST_niid')."""
    a = alphas[0].astype(jnp.float32)

    # NHWC end-to-end: channels live on the lane axis.
    x = jnp.transpose(x_nchw, (0, 2, 3, 1))
    N = x.shape[0]

    w1c, b1c, K1, C1 = prep_conv_params(server_p['conv1_w'], server_p['conv1_b'],
                                        client_p['conv1_w'], client_p['conv1_b'], a)
    w2c, b2c, K2, C2 = prep_conv_params(server_p['conv2_w'], server_p['conv2_b'],
                                        client_p['conv2_w'], client_p['conv2_b'], a)

    # conv1 + max_pool2d(2) + relu  (one pallas_call)
    y1, POH1, POW1 = conv_pool_relu(x, w1c, b1c, K1)            # (N*12*12, 128)
    x2 = y1[:, :C1].reshape(N, POH1, POW1, C1)                  # NHWC (N, 12, 12, 10)

    # conv2_drop (Dropout2d) -> identity; conv2 + max_pool2d(2) + relu
    y2, POH2, POW2 = conv_pool_relu(x2, w2c, b2c, K2)           # (N*4*4, 128)

    # flatten NHWC -> (N, 320); fc1 columns were permuted to match this order.
    feat = y2[:, :C2].reshape(N, POH2 * POW2 * C2)

    fw1, fb1, fw2, fb2 = prep_fc_params(server_p, client_p, a, (POH2, POW2), C2)

    out = pl.pallas_call(
        functools.partial(fc_stack_kernel, out_dim=out_dim),
        out_shape=jax.ShapeDtypeStruct((N, LANE), jnp.float32),
        in_specs=[_vmem()] * 5,
        out_specs=_vmem(),
    )(feat, fw1, fb1, fw2, fb2)
    return out[:, :out_dim]


# ----------------------------------------------------------------------------
# Pure-JAX reference (NCHW, mirrors the PyTorch forward) for correctness check
# ----------------------------------------------------------------------------
def _ref_im2col_nchw(x, K):
    N, C, H, W = x.shape
    OH, OW = H - K + 1, W - K + 1
    cols = [x[:, :, kh:kh + OH, kw:kw + OW] for kh in range(K) for kw in range(K)]
    p = jnp.stack(cols, axis=2)            # (N, C, K*K, OH, OW)
    p = p.transpose(0, 3, 4, 1, 2)         # (N, OH, OW, C, K*K)
    return p.reshape(N * OH * OW, C * K * K), OH, OW


def _ref_combined_linear(x, wa, ba, wb, bb, a):
    return (1.0 - a) * (x @ wa.T + ba) + a * (x @ wb.T + bb)


def _ref_combined_conv(x, wa, ba, wb, bb, a):
    N = x.shape[0]
    Cout, _, K, _ = wa.shape
    patches, OH, OW = _ref_im2col_nchw(x, K)
    y = _ref_combined_linear(patches, wa.reshape(Cout, -1), ba,
                             wb.reshape(Cout, -1), bb, a)
    return y.reshape(N, OH, OW, Cout).transpose(0, 3, 1, 2)


def _ref_pool_relu(x):
    N, C, H, W = x.shape
    y = x.reshape(N, C, H // 2, 2, W // 2, 2).max(axis=(3, 5))
    return jnp.maximum(y, 0.0)


def net3_forward_ref(x, sp, cp, alphas):
    a = alphas[0]
    x = _ref_pool_relu(_ref_combined_conv(x, sp['conv1_w'], sp['conv1_b'],
                                          cp['conv1_w'], cp['conv1_b'], a))
    x = _ref_pool_relu(_ref_combined_conv(x, sp['conv2_w'], sp['conv2_b'],
                                          cp['conv2_w'], cp['conv2_b'], a))
    x = x.reshape(-1, 320)
    x = jnp.maximum(_ref_combined_linear(x, sp['fc1_w'], sp['fc1_b'],
                                         cp['fc1_w'], cp['fc1_b'], a), 0.0)
    x = _ref_combined_linear(x, sp['fc2_w'], sp['fc2_b'],
                             cp['fc2_w'], cp['fc2_b'], a)
    return jax.nn.log_softmax(x, axis=-1)


# ----------------------------------------------------------------------------
# Parameter construction (deterministic, torch-default-style uniform init)
# ----------------------------------------------------------------------------
def make_params(key, out=10):
    shapes = {
        'conv1_w': ((10, 1, 5, 5), 1 * 5 * 5),
        'conv1_b': ((10,), 1 * 5 * 5),
        'conv2_w': ((20, 10, 5, 5), 10 * 5 * 5),
        'conv2_b': ((20,), 10 * 5 * 5),
        'fc1_w': ((100, 320), 320),
        'fc1_b': ((100,), 320),
        'fc2_w': ((out, 100), 100),
        'fc2_b': ((out,), 100),
    }
    params = {}
    keys = jax.random.split(key, len(shapes))
    for k, (name, (shape, fan_in)) in zip(keys, shapes.items()):
        bound = 1.0 / np.sqrt(fan_in)
        params[name] = jax.random.uniform(k, shape, jnp.float32, -bound, bound)
    return params


# ----------------------------------------------------------------------------
if __name__ == "__main__":
    key = jax.random.PRNGKey(0)
    k_x, k_srv, k_cli = jax.random.split(key, 3)

    # MNIST-style input: the view(-1, 320) in forward implies 28x28 single-channel.
    batch = 2
    x = jax.random.normal(k_x, (batch, 1, 28, 28), jnp.float32)

    server_params = make_params(k_srv, out=10)   # Net3's own (frozen) layers
    client_params = make_params(k_cli, out=10)   # client_model layers
    alphas = jnp.array([0.3], jnp.float32)       # nn.Parameter(alphas); only [0] is used

    out = net3_forward(x, server_params, client_params, alphas, out_dim=10)
    out = jax.block_until_ready(out)

    ref = net3_forward_ref(x, server_params, client_params, alphas)
    np.testing.assert_allclose(np.asarray(out), np.asarray(ref),
                               rtol=1e-4, atol=1e-4)
    assert out.shape == (batch, 10)
    # rows of exp(log_softmax) must sum to 1
    np.testing.assert_allclose(np.exp(np.asarray(out)).sum(-1),
                               np.ones(batch), rtol=1e-4, atol=1e-4)

    print("KERNEL_OK")
</pallas_src>

<mosaic_0001>
module attributes {stable_mosaic.version = 11 : i64} {
  func.func @conv_pool_relu_kernel(%arg0: memref<288x32xf32, #tpu.memory_space<vmem>>, %arg1: memref<288x32xf32, #tpu.memory_space<vmem>>, %arg2: memref<288x32xf32, #tpu.memory_space<vmem>>, %arg3: memref<288x32xf32, #tpu.memory_space<vmem>>, %arg4: memref<32x128xf32, #tpu.memory_space<vmem>>, %arg5: memref<1x128xf32, #tpu.memory_space<vmem>>, %arg6: memref<288x128xf32, #tpu.memory_space<vmem>>) attributes {dimension_semantics = [], scalar_prefetch = 0 : i64, scratch_operands = 0 : i64, tpu.core_type = #tpu.core_type<tc>} {
    %c0 = arith.constant 0 : index
    %c0_0 = arith.constant 0 : index
    %0 = vector.load %arg4[%c0, %c0_0] : memref<32x128xf32, #tpu.memory_space<vmem>>, vector<32x128xf32>
    %c0_1 = arith.constant 0 : index
    %c0_2 = arith.constant 0 : index
    %1 = vector.load %arg0[%c0_1, %c0_2] : memref<288x32xf32, #tpu.memory_space<vmem>>, vector<288x32xf32>
    %cst = arith.constant dense<0.000000e+00> : vector<288x128xf32>
    %2 = tpu.matmul %1, %0, %cst {dimension_numbers = #tpu.dot_dimension_numbers<[1], [0], [0], [1], [0, 0, 1, 1], [], []>} : vector<288x32xf32>, vector<32x128xf32>, vector<288x128xf32> -> vector<288x128xf32>
    %c0_3 = arith.constant 0 : index
    %c0_4 = arith.constant 0 : index
    %3 = vector.load %arg1[%c0_3, %c0_4] : memref<288x32xf32, #tpu.memory_space<vmem>>, vector<288x32xf32>
    %cst_5 = arith.constant dense<0.000000e+00> : vector<288x128xf32>
    %4 = tpu.matmul %3, %0, %cst_5 {dimension_numbers = #tpu.dot_dimension_numbers<[1], [0], [0], [1], [0, 0, 1, 1], [], []>} : vector<288x32xf32>, vector<32x128xf32>, vector<288x128xf32> -> vector<288x128xf32>
    %5 = arith.maximumf %2, %4 : vector<288x128xf32>
    %c0_6 = arith.constant 0 : index
    %c0_7 = arith.constant 0 : index
    %6 = vector.load %arg2[%c0_6, %c0_7] : memref<288x32xf32, #tpu.memory_space<vmem>>, vector<288x32xf32>
    %cst_8 = arith.constant dense<0.000000e+00> : vector<288x128xf32>
    %7 = tpu.matmul %6, %0, %cst_8 {dimension_numbers = #tpu.dot_dimension_numbers<[1], [0], [0], [1], [0, 0, 1, 1], [], []>} : vector<288x32xf32>, vector<32x128xf32>, vector<288x128xf32> -> vector<288x128xf32>
    %8 = arith.maximumf %5, %7 : vector<288x128xf32>
    %c0_9 = arith.constant 0 : index
    %c0_10 = arith.constant 0 : index
    %9 = vector.load %arg3[%c0_9, %c0_10] : memref<288x32xf32, #tpu.memory_space<vmem>>, vector<288x32xf32>
    %cst_11 = arith.constant dense<0.000000e+00> : vector<288x128xf32>
    %10 = tpu.matmul %9, %0, %cst_11 {dimension_numbers = #tpu.dot_dimension_numbers<[1], [0], [0], [1], [0, 0, 1, 1], [], []>} : vector<288x32xf32>, vector<32x128xf32>, vector<288x128xf32> -> vector<288x128xf32>
    %11 = arith.maximumf %8, %10 : vector<288x128xf32>
    %c0_12 = arith.constant 0 : index
    %c0_13 = arith.constant 0 : index
    %12 = vector.load %arg5[%c0_12, %c0_13] : memref<1x128xf32, #tpu.memory_space<vmem>>, vector<1x128xf32>
    %13 = vector.broadcast %12 : vector<1x128xf32> to vector<288x128xf32>
    %14 = arith.addf %11, %13 : vector<288x128xf32>
    %cst_14 = arith.constant 0.000000e+00 : f32
    %15 = vector.broadcast %cst_14 : f32 to vector<288x128xf32>
    %16 = arith.maximumf %14, %15 : vector<288x128xf32>
    %c0_15 = arith.constant 0 : index
    %c0_16 = arith.constant 0 : index
    %17 = vector.load %arg6[%c0_15, %c0_16] : memref<288x128xf32, #tpu.memory_space<vmem>>, vector<288x128xf32>
    tpu.vector_store %arg6[%c0_15, %c0_16], %16 {strides = array<i32>} : memref<288x128xf32, #tpu.memory_space<vmem>>, vector<288x128xf32>,
    return
  }
}

</mosaic_0001>

<llo_original>
// kernel: tpu_custom_call.1
$region0: #{tpu_custom_call.1}
  #allocation0 [shape = 'u32[]', space=smem, size = 0x4, offset = 0x4, fixed_abs, tag = 'smem constant byte address 0x4 - core index']
  #allocation1 [shape = 'u32[144,128]{1,0:T(1,128)}', space=vmem, size = 0x12000, scoped, tag = 'internal scratch']
  %s0 = inlined_call_operand.vmem [shape: f32[288,32], index: 0, kind: input, shape index: {}]
  %s1 = inlined_call_operand.vmem [shape: f32[288,32], index: 1, kind: input, shape index: {}]
  %s2 = inlined_call_operand.vmem [shape: f32[288,32], index: 2, kind: input, shape index: {}]
  %s3 = inlined_call_operand.vmem [shape: f32[288,32], index: 3, kind: input, shape index: {}]
  %s4 = inlined_call_operand.vmem [shape: f32[32,128], index: 4, kind: input, shape index: {}]
  %s5 = inlined_call_operand.vmem [shape: f32[1,128], index: 5, kind: input, shape index: {}]
  %s6 = inlined_call_operand.hbm [shape: f32[288,128], index: 6, kind: output, shape index: {}]
  %s7 = sld [smem:[#allocation0]]
  $region34: #{tpu_custom_call.1} parent=0
    _
  %s9 = ssub.s32 1, %s7
  %s10 = scalar_select 0, %s9, %s7
  $region1: #{tpu_custom_call.1} parent=0
    #allocation2 [shape = 'u8[147456]{0}', space=vmem, size = 0x24000, scoped, tag = 'output window, operand 0, single buffered']
    #allocation3 [shape = 's32[1]{0}', space=sflag, size = 0x4, scoped, tag = 'scoped memory for tpu_custom_call.1']
    %11 = vsyncpa [#allocation3], 0
    // Predicated region
    $region2: #{tpu_custom_call.1} parent=1 // pred_check
      _
    $region3: #{tpu_custom_call.1} parent=1 // pred_check_branch
      %13 = sbr.rel (0) target = $region5
    $region4: #{tpu_custom_call.1} parent=1 // pred_region
      _
    $region5: #{tpu_custom_call.1} parent=1 // pred_fallthru
      _
    // Predicated region
    $region6: #{tpu_custom_call.1} parent=1 // pred_check
      _
    $region7: #{tpu_custom_call.1} parent=1 // pred_check_branch
      %15 = sbr.rel (0) target = $region9
    $region8: #{tpu_custom_call.1} parent=1 // pred_region
      _
    $region9: #{tpu_custom_call.1} parent=1 // pred_fallthru
      _
    // Predicated region
    $region10: #{tpu_custom_call.1} parent=1 // pred_check
      _
    $region11: #{tpu_custom_call.1} parent=1 // pred_check_branch
      %17 = sbr.rel (0) target = $region13
    $region12: #{tpu_custom_call.1} parent=1 // pred_region
      _
    $region13: #{tpu_custom_call.1} parent=1 // pred_fallthru
      _
    // Predicated region
    $region14: #{tpu_custom_call.1} parent=1 // pred_check
      _
    $region15: #{tpu_custom_call.1} parent=1 // pred_check_branch
      %19 = sbr.rel (0) target = $region17
    $region16: #{tpu_custom_call.1} parent=1 // pred_region
      _
    $region17: #{tpu_custom_call.1} parent=1 // pred_fallthru
      _
    // Predicated region
    $region18: #{tpu_custom_call.1} parent=1 // pred_check
      _
    $region19: #{tpu_custom_call.1} parent=1 // pred_check_branch
      %21 = sbr.rel (0) target = $region21
    $region20: #{tpu_custom_call.1} parent=1 // pred_region
      _
    $region21: #{tpu_custom_call.1} parent=1 // pred_fallthru
      _
    // Predicated region
    $region22: #{tpu_custom_call.1} parent=1 // pred_check
      _
    $region23: #{tpu_custom_call.1} parent=1 // pred_check_branch
      %23 = sbr.rel (0) target = $region25
    $region24: #{tpu_custom_call.1} parent=1 // pred_region
      _
    $region25: #{tpu_custom_call.1} parent=1 // pred_fallthru
      _
    %v24 = vld [vmem:[%s4] sm:$0xff]
    %v25 = vld [vmem:[%s4 + $0x8] sm:$0xff]
    %v26 = vld [vmem:[%s4 + $0x10] sm:$0xff]
    %v27 = vld [vmem:[%s4 + $0x18] sm:$0xff]
    %v28 = vld [vmem:[%s0] sm:$0xff]
    %v29 = vld [vmem:[%s0 + $0x8] sm:$0xff]
    %v30 = vld [vmem:[%s0 + $0x10] sm:$0xff]
    %v31 = vld [vmem:[%s0 + $0x18] sm:$0xff]
    %v32 = vld [vmem:[%s0 + $0x20] sm:$0xff]
    %v33 = vld [vmem:[%s0 + $0x28] sm:$0xff]
    %v34 = vld [vmem:[%s0 + $0x30] sm:$0xff]
    %v35 = vld [vmem:[%s0 + $0x38] sm:$0xff]
    %v36 = vld [vmem:[%s0 + $0x40] sm:$0xff]
    %v37 = vld [vmem:[%s0 + $0x48] sm:$0xff]
    %v38 = vld [vmem:[%s0 + $0x50] sm:$0xff]
    %v39 = vld [vmem:[%s0 + $0x58] sm:$0xff]
    %v40 = vld [vmem:[%s0 + $0x60] sm:$0xff]
    %v41 = vld [vmem:[%s0 + $0x68] sm:$0xff]
    %v42 = vld [vmem:[%s0 + $0x70] sm:$0xff]
    %v43 = vld [vmem:[%s0 + $0x78] sm:$0xff]
    %v44 = vld [vmem:[%s0 + $0x80] sm:$0xff]
    %v45 = vld [vmem:[%s0 + $0x88] sm:$0xff]
    %v46 = vld [vmem:[%s0 + $0x90] sm:$0xff]
    %v47 = vld [vmem:[%s0 + $0x98] sm:$0xff]
    %v48 = vld [vmem:[%s0 + $0xa0] sm:$0xff]
    %v49 = vld [vmem:[%s0 + $0xa8] sm:$0xff]
    %v50 = vld [vmem:[%s0 + $0xb0] sm:$0xff]
    %v51 = vld [vmem:[%s0 + $0xb8] sm:$0xff]
    %v52 = vld [vmem:[%s0 + $0xc0] sm:$0xff]
    %v53 = vld [vmem:[%s0 + $0xc8] sm:$0xff]
    %v54 = vld [vmem:[%s0 + $0xd0] sm:$0xff]
    %v55 = vld [vmem:[%s0 + $0xd8] sm:$0xff]
    %v56 = vld [vmem:[%s0 + $0xe0] sm:$0xff]
    %v57 = vld [vmem:[%s0 + $0xe8] sm:$0xff]
    %v58 = vld [vmem:[%s0 + $0xf0] sm:$0xff]
    %v59 = vld [vmem:[%s0 + $0xf8] sm:$0xff]
    %v60 = vld [vmem:[%s0 + $0x100] sm:$0xff]
    %v61 = vld [vmem:[%s0 + $0x108] sm:$0xff]
    %v62 = vld [vmem:[%s0 + $0x110] sm:$0xff]
    %v63 = vld [vmem:[%s0 + $0x118] sm:$0xff]
    %vm64 = vcmask 261120
    %v66 = vsel %vm64, %v28, 0
    %v69 = vsel %vm64, %v29, 0
    %v72 = vsel %vm64, %v30, 0
    %v75 = vsel %vm64, %v31, 0
    %v78 = vsel %vm64, %v32, 0
    %v81 = vsel %vm64, %v33, 0
    %v84 = vsel %vm64, %v34, 0
    %v87 = vsel %vm64, %v35, 0
    %v90 = vsel %vm64, %v36, 0
    %v93 = vsel %vm64, %v37, 0
    %v96 = vsel %vm64, %v38, 0
    %v99 = vsel %vm64, %v39, 0
    %v102 = vsel %vm64, %v40, 0
    %v105 = vsel %vm64, %v41, 0
    %v108 = vsel %vm64, %v42, 0
    %v111 = vsel %vm64, %v43, 0
    %v114 = vsel %vm64, %v44, 0
    %v117 = vsel %vm64, %v45, 0
    %v120 = vsel %vm64, %v46, 0
    %v123 = vsel %vm64, %v47, 0
    %v126 = vsel %vm64, %v48, 0
    %v129 = vsel %vm64, %v49, 0
    %v132 = vsel %vm64, %v50, 0
    %v135 = vsel %vm64, %v51, 0
    %v138 = vsel %vm64, %v52, 0
    %v141 = vsel %vm64, %v53, 0
    %v144 = vsel %vm64, %v54, 0
    %v147 = vsel %vm64, %v55, 0
    %v150 = vsel %vm64, %v56, 0
    %v153 = vsel %vm64, %v57, 0
    %v156 = vsel %vm64, %v58, 0
    %v159 = vsel %vm64, %v59, 0
    %v162 = vsel %vm64, %v60, 0
    %v165 = vsel %vm64, %v61, 0
    %v168 = vsel %vm64, %v62, 0
    %v171 = vsel %vm64, %v63, 0
    %173 = vmatprep.subr.mxu0 0.0
    %174 = vmatpush1.msra.mxu0 0.0
    %175 = vmatprep.subr.mxu0 0.0
    %176 = vmatpush1.msra.mxu0 0.0
    %177 = vmatprep.subr.mxu0 0.0
    %178 = vmatpush1.msra.mxu0 0.0
    %179 = vmatprep.subr.mxu0 0.0
    %180 = vmatpush1.msra.mxu0 0.0
    %181 = vmatprep.subr.mxu0 0.0
    %182 = vmatpush1.msra.mxu0 0.0
    %183 = vmatprep.subr.mxu0 0.0
    %184 = vmatpush1.msra.mxu0 0.0
    %185 = vmatprep.subr.mxu0 0.0
    %186 = vmatpush1.msra.mxu0 0.0
    %187 = vmatprep.subr.mxu0 0.0
    %188 = vmatpush1.msra.mxu0 0.0
    %189 = vmatprep.subr.mxu0 0.0
    %190 = vmatpush1.msra.mxu0 0.0
    %191 = vmatprep.subr.mxu0 0.0
    %192 = vmatpush1.msra.mxu0 0.0
    %193 = vmatprep.subr.mxu0 0.0
    %194 = vmatpush1.msra.mxu0 0.0
    %195 = vmatprep.subr.mxu0 0.0
    %196 = vmatpush1.msra.mxu0 0.0
    %197 = vmatprep.subr.mxu0 0.0
    %198 = vmatpush1.msra.mxu0 %v27
    %199 = vmatprep.subr.mxu0 0.0
    %200 = vmatpush1.msra.mxu0 %v26
    %201 = vmatprep.subr.mxu0 0.0
    %202 = vmatpush1.msra.mxu0 %v25
    %203 = vmatprep.subr.mxu0 0.0
    %204 = vmatpush1.msra.mxu0 %v24
    %205 = vmatprep.subr.mxu0 0.0
    %206 = vmatpush2.msra.mxu0 0.0
    %207 = vmatprep.subr.mxu0 0.0
    %208 = vmatpush2.msra.mxu0 0.0
    %209 = vmatprep.subr.mxu0 0.0
    %210 = vmatpush2.msra.mxu0 0.0
    %211 = vmatprep.subr.mxu0 0.0
    %212 = vmatpush2.msra.mxu0 0.0
    %213 = vmatprep.subr.mxu0 0.0
    %214 = vmatpush2.msra.mxu0 0.0
    %215 = vmatprep.subr.mxu0 0.0
    %216 = vmatpush2.msra.mxu0 0.0
    %217 = vmatprep.subr.mxu0 0.0
    %218 = vmatpush2.msra.mxu0 0.0
    %219 = vmatprep.subr.mxu0 0.0
    %220 = vmatpush2.msra.mxu0 0.0
    %221 = vmatprep.subr.mxu0 0.0
    %222 = vmatpush2.msra.mxu0 0.0
    %223 = vmatprep.subr.mxu0 0.0
    %224 = vmatpush2.msra.mxu0 0.0
    %225 = vmatprep.subr.mxu0 0.0
    %226 = vmatpush2.msra.mxu0 0.0
    %227 = vmatprep.subr.mxu0 0.0
    %228 = vmatpush2.msra.mxu0 0.0
    %229 = vmatprep.subr.mxu0 0.0
    %230 = vmatpush2.msra.mxu0 0.0
    %231 = vmatprep.subr.mxu0 0.0
    %232 = vmatpush2.msra.mxu0 0.0
    %233 = vmatprep.subr.mxu0 0.0
    %234 = vmatpush2.msra.mxu0 0.0
    %235 = vmatprep.subr.mxu0 0.0
    %236 = vmatpush2.msra.mxu0 0.0
    %237 = vmatprep.mubr.f32.mxu0 0.0
    %238 = vmatmul.mubr.f32.gmra.mxu0 %v66
    %v239 = vpop.f32.mrf.mxu0
    %v240 = vadd.f32 0.0, %v239
    %v241 = vpop.f32.mrf.mxu0
    %242 = vmatprep.mubr.f32.mxu0 0.0
    %243 = vmatmul.mubr.f32.gmra.mxu0 %v69
    %v244 = vpop.f32.mrf.mxu0
    %v245 = vadd.f32 0.0, %v244
    %v246 = vpop.f32.mrf.mxu0
    %247 = vmatprep.mubr.f32.mxu0 0.0
    %248 = vmatmul.mubr.f32.gmra.mxu0 %v72
    %v249 = vpop.f32.mrf.mxu0
    %v250 = vadd.f32 0.0, %v249
    %v251 = vpop.f32.mrf.mxu0
    %252 = vmatprep.mubr.f32.mxu0 0.0
    %253 = vmatmul.mubr.f32.gmra.mxu0 %v75
    %v254 = vpop.f32.mrf.mxu0
    %v255 = vadd.f32 0.0, %v254
    %v256 = vpop.f32.mrf.mxu0
    %257 = vmatprep.mubr.f32.mxu0 0.0
    %258 = vmatmul.mubr.f32.gmra.mxu0 %v78
    %v259 = vpop.f32.mrf.mxu0
    %v260 = vadd.f32 0.0, %v259
    %v261 = vpop.f32.mrf.mxu0
    %262 = vmatprep.mubr.f32.mxu0 0.0
    %263 = vmatmul.mubr.f32.gmra.mxu0 %v81
    %v264 = vpop.f32.mrf.mxu0
    %v265 = vadd.f32 0.0, %v264
    %v266 = vpop.f32.mrf.mxu0
    %267 = vmatprep.mubr.f32.mxu0 0.0
    %268 = vmatmul.mubr.f32.gmra.mxu0 %v84
    %v269 = vpop.f32.mrf.mxu0
    %v270 = vadd.f32 0.0, %v269
    %v271 = vpop.f32.mrf.mxu0
    %272 = vmatprep.mubr.f32.mxu0 0.0
    %273 = vmatmul.mubr.f32.gmra.mxu0 %v87
    %v274 = vpop.f32.mrf.mxu0
    %v275 = vadd.f32 0.0, %v274
    %v276 = vpop.f32.mrf.mxu0
    %277 = vmatprep.mubr.f32.mxu0 0.0
    %278 = vmatmul.mubr.f32.gmra.mxu0 %v90
    %v279 = vpop.f32.mrf.mxu0
    %v280 = vadd.f32 0.0, %v279
    %v281 = vpop.f32.mrf.mxu0
    %282 = vmatprep.mubr.f32.mxu0 0.0
    %283 = vmatmul.mubr.f32.gmra.mxu0 %v93
    %v284 = vpop.f32.mrf.mxu0
    %v285 = vadd.f32 0.0, %v284
    %v286 = vpop.f32.mrf.mxu0
    %287 = vmatprep.mubr.f32.mxu0 0.0
    %288 = vmatmul.mubr.f32.gmra.mxu0 %v96
    %v289 = vpop.f32.mrf.mxu0
    %v290 = vadd.f32 0.0, %v289
    %v291 = vpop.f32.mrf.mxu0
    %292 = vmatprep.mubr.f32.mxu0 0.0
    %293 = vmatmul.mubr.f32.gmra.mxu0 %v99
    %v294 = vpop.f32.mrf.mxu0
    %v295 = vadd.f32 0.0, %v294
    %v296 = vpop.f32.mrf.mxu0
    %297 = vmatprep.mubr.f32.mxu0 0.0
    %298 = vmatmul.mubr.f32.gmra.mxu0 %v102
    %v299 = vpop.f32.mrf.mxu0
    %v300 = vadd.f32 0.0, %v299
    %v301 = vpop.f32.mrf.mxu0
    %302 = vmatprep.mubr.f32.mxu0 0.0
    %303 = vmatmul.mubr.f32.gmra.mxu0 %v105
    %v304 = vpop.f32.mrf.mxu0
    %v305 = vadd.f32 0.0, %v304
    %v306 = vpop.f32.mrf.mxu0
    %307 = vmatprep.mubr.f32.mxu0 0.0
    %308 = vmatmul.mubr.f32.gmra.mxu0 %v108
    %v309 = vpop.f32.mrf.mxu0
    %v310 = vadd.f32 0.0, %v309
    %v311 = vpop.f32.mrf.mxu0
    %312 = vmatprep.mubr.f32.mxu0 0.0
    %313 = vmatmul.mubr.f32.gmra.mxu0 %v111
    %v314 = vpop.f32.mrf.mxu0
    %v315 = vadd.f32 0.0, %v314
    %v316 = vpop.f32.mrf.mxu0
    %317 = vmatprep.mubr.f32.mxu0 0.0
    %318 = vmatmul.mubr.f32.gmra.mxu0 %v114
    %v319 = vpop.f32.mrf.mxu0
    %v320 = vadd.f32 0.0, %v319
    %v321 = vpop.f32.mrf.mxu0
    %322 = vmatprep.mubr.f32.mxu0 0.0
    %323 = vmatmul.mubr.f32.gmra.mxu0 %v117
    %v324 = vpop.f32.mrf.mxu0
    %v325 = vadd.f32 0.0, %v324
    %v326 = vpop.f32.mrf.mxu0
    %327 = vmatprep.mubr.f32.mxu0 0.0
    %328 = vmatmul.mubr.f32.gmra.mxu0 %v120
    %v329 = vpop.f32.mrf.mxu0
    %v330 = vadd.f32 0.0, %v329
    %v331 = vpop.f32.mrf.mxu0
    %332 = vmatprep.mubr.f32.mxu0 0.0
    %333 = vmatmul.mubr.f32.gmra.mxu0 %v123
    %v334 = vpop.f32.mrf.mxu0
    %v335 = vadd.f32 0.0, %v334
    %v336 = vpop.f32.mrf.mxu0
    %337 = vmatprep.mubr.f32.mxu0 0.0
    %338 = vmatmul.mubr.f32.gmra.mxu0 %v126
    %v339 = vpop.f32.mrf.mxu0
    %v340 = vadd.f32 0.0, %v339
    %v341 = vpop.f32.mrf.mxu0
    %342 = vmatprep.mubr.f32.mxu0 0.0
    %343 = vmatmul.mubr.f32.gmra.mxu0 %v129
    %v344 = vpop.f32.mrf.mxu0
    %v345 = vadd.f32 0.0, %v344
    %v346 = vpop.f32.mrf.mxu0
    %347 = vmatprep.mubr.f32.mxu0 0.0
    %348 = vmatmul.mubr.f32.gmra.mxu0 %v132
    %v349 = vpop.f32.mrf.mxu0
    %v350 = vadd.f32 0.0, %v349
    %v351 = vpop.f32.mrf.mxu0
    %352 = vmatprep.mubr.f32.mxu0 0.0
    %353 = vmatmul.mubr.f32.gmra.mxu0 %v135
    %v354 = vpop.f32.mrf.mxu0
    %v355 = vadd.f32 0.0, %v354
    %v356 = vpop.f32.mrf.mxu0
    %357 = vmatprep.mubr.f32.mxu0 0.0
    %358 = vmatmul.mubr.f32.gmra.mxu0 %v138
    %v359 = vpop.f32.mrf.mxu0
    %v360 = vadd.f32 0.0, %v359
    %v361 = vpop.f32.mrf.mxu0
    %362 = vmatprep.mubr.f32.mxu0 0.0
    %363 = vmatmul.mubr.f32.gmra.mxu0 %v141
    %v364 = vpop.f32.mrf.mxu0
    %v365 = vadd.f32 0.0, %v364
    %v366 = vpop.f32.mrf.mxu0
    %367 = vmatprep.mubr.f32.mxu0 0.0
    %368 = vmatmul.mubr.f32.gmra.mxu0 %v144
    %v369 = vpop.f32.mrf.mxu0
    %v370 = vadd.f32 0.0, %v369
    %v371 = vpop.f32.mrf.mxu0
    %372 = vmatprep.mubr.f32.mxu0 0.0
    %373 = vmatmul.mubr.f32.gmra.mxu0 %v147
    %v374 = vpop.f32.mrf.mxu0
    %v375 = vadd.f32 0.0, %v374
    %v376 = vpop.f32.mrf.mxu0
    %377 = vmatprep.mubr.f32.mxu0 0.0
    %378 = vmatmul.mubr.f32.gmra.mxu0 %v150
    %v379 = vpop.f32.mrf.mxu0
    %v380 = vadd.f32 0.0, %v379
    %v381 = vpop.f32.mrf.mxu0
    %382 = vmatprep.mubr.f32.mxu0 0.0
    %383 = vmatmul.mubr.f32.gmra.mxu0 %v153
    %v384 = vpop.f32.mrf.mxu0
    %v385 = vadd.f32 0.0, %v384
    %v386 = vpop.f32.mrf.mxu0
    %387 = vmatprep.mubr.f32.mxu0 0.0
    %388 = vmatmul.mubr.f32.gmra.mxu0 %v156
    %v389 = vpop.f32.mrf.mxu0
    %v390 = vadd.f32 0.0, %v389
    %v391 = vpop.f32.mrf.mxu0
    %392 = vmatprep.mubr.f32.mxu0 0.0
    %393 = vmatmul.mubr.f32.gmra.mxu0 %v159
    %v394 = vpop.f32.mrf.mxu0
    %v395 = vadd.f32 0.0, %v394
    %v396 = vpop.f32.mrf.mxu0
    %397 = vmatprep.mubr.f32.mxu0 0.0
    %398 = vmatmul.mubr.f32.gmra.mxu0 %v162
    %v399 = vpop.f32.mrf.mxu0
    %v400 = vadd.f32 0.0, %v399
    %v401 = vpop.f32.mrf.mxu0
    %402 = vmatprep.mubr.f32.mxu0 0.0
    %403 = vmatmul.mubr.f32.gmra.mxu0 %v165
    %v404 = vpop.f32.mrf.mxu0
    %v405 = vadd.f32 0.0, %v404
    %v406 = vpop.f32.mrf.mxu0
    %407 = vmatprep.mubr.f32.mxu0 0.0
    %408 = vmatmul.mubr.f32.gmra.mxu0 %v168
    %v409 = vpop.f32.mrf.mxu0
    %v410 = vadd.f32 0.0, %v409
    %v411 = vpop.f32.mrf.mxu0
    %412 = vmatprep.mubr.f32.mxu0 0.0
    %413 = vmatmul.mubr.f32.gmra.mxu0 %v171
    %v414 = vpop.f32.mrf.mxu0
    %v415 = vadd.f32 0.0, %v414
    %v416 = vpop.f32.mrf.mxu0
    %417 = vdwg.mxu0
    %v418 = vld [vmem:[%s1] sm:$0xff]
    %v419 = vld [vmem:[%s1 + $0x8] sm:$0xff]
    %v420 = vld [vmem:[%s1 + $0x10] sm:$0xff]
    %v421 = vld [vmem:[%s1 + $0x18] sm:$0xff]
    %v422 = vld [vmem:[%s1 + $0x20] sm:$0xff]
    %v423 = vld [vmem:[%s1 + $0x28] sm:$0xff]
    %v424 = vld [vmem:[%s1 + $0x30] sm:$0xff]
    %v425 = vld [vmem:[%s1 + $0x38] sm:$0xff]
    %v426 = vld [vmem:[%s1 + $0x40] sm:$0xff]
    %v427 = vld [vmem:[%s1 + $0x48] sm:$0xff]
    %v428 = vld [vmem:[%s1 + $0x50] sm:$0xff]
    %v429 = vld [vmem:[%s1 + $0x58] sm:$0xff]
    %v430 = vld [vmem:[%s1 + $0x60] sm:$0xff]
    %v431 = vld [vmem:[%s1 + $0x68] sm:$0xff]
    %v432 = vld [vmem:[%s1 + $0x70] sm:$0xff]
    %v433 = vld [vmem:[%s1 + $0x78] sm:$0xff]
    %v434 = vld [vmem:[%s1 + $0x80] sm:$0xff]
    %v435 = vld [vmem:[%s1 + $0x88] sm:$0xff]
    %v436 = vld [vmem:[%s1 + $0x90] sm:$0xff]
    %v437 = vld [vmem:[%s1 + $0x98] sm:$0xff]
    %v438 = vld [vmem:[%s1 + $0xa0] sm:$0xff]
    %v439 = vld [vmem:[%s1 + $0xa8] sm:$0xff]
    %v440 = vld [vmem:[%s1 + $0xb0] sm:$0xff]
    %v441 = vld [vmem:[%s1 + $0xb8] sm:$0xff]
    %v442 = vld [vmem:[%s1 + $0xc0] sm:$0xff]
    %v443 = vld [vmem:[%s1 + $0xc8] sm:$0xff]
    %v444 = vld [vmem:[%s1 + $0xd0] sm:$0xff]
    %v445 = vld [vmem:[%s1 + $0xd8] sm:$0xff]
    %v446 = vld [vmem:[%s1 + $0xe0] sm:$0xff]
    %v447 = vld [vmem:[%s1 + $0xe8] sm:$0xff]
    %v448 = vld [vmem:[%s1 + $0xf0] sm:$0xff]
    %v449 = vld [vmem:[%s1 + $0xf8] sm:$0xff]
    %v450 = vld [vmem:[%s1 + $0x100] sm:$0xff]
    %v451 = vld [vmem:[%s1 + $0x108] sm:$0xff]
    %v452 = vld [vmem:[%s1 + $0x110] sm:$0xff]
    %v453 = vld [vmem:[%s1 + $0x118] sm:$0xff]
    %v455 = vsel %vm64, %v418, 0
    %v458 = vsel %vm64, %v419, 0
    %v461 = vsel %vm64, %v420, 0
    %v464 = vsel %vm64, %v421, 0
    %v467 = vsel %vm64, %v422, 0
    %v470 = vsel %vm64, %v423, 0
    %v473 = vsel %vm64, %v424, 0
    %v476 = vsel %vm64, %v425, 0
    %v479 = vsel %vm64, %v426, 0
    %v482 = vsel %vm64, %v427, 0
    %v485 = vsel %vm64, %v428, 0
    %v488 = vsel %vm64, %v429, 0
    %v491 = vsel %vm64, %v430, 0
    %v494 = vsel %vm64, %v431, 0
    %v497 = vsel %vm64, %v432, 0
    %v500 = vsel %vm64, %v433, 0
    %v503 = vsel %vm64, %v434, 0
    %v506 = vsel %vm64, %v435, 0
    %v509 = vsel %vm64, %v436, 0
    %v512 = vsel %vm64, %v437, 0
    %v515 = vsel %vm64, %v438, 0
    %v518 = vsel %vm64, %v439, 0
    %v521 = vsel %vm64, %v440, 0
    %v524 = vsel %vm64, %v441, 0
    %v527 = vsel %vm64, %v442, 0
    %v530 = vsel %vm64, %v443, 0
    %v533 = vsel %vm64, %v444, 0
    %v536 = vsel %vm64, %v445, 0
    %v539 = vsel %vm64, %v446, 0
    %v542 = vsel %vm64, %v447, 0
    %v545 = vsel %vm64, %v448, 0
    %v548 = vsel %vm64, %v449, 0
    %v551 = vsel %vm64, %v450, 0
    %v554 = vsel %vm64, %v451, 0
    %v557 = vsel %vm64, %v452, 0
    %v560 = vsel %vm64, %v453, 0
    %562 = vmatprep.subr.mxu0 0.0
    %563 = vmatpush1.msra.mxu0 0.0
    %564 = vmatprep.subr.mxu0 0.0
    %565 = vmatpush1.msra.mxu0 0.0
    %566 = vmatprep.subr.mxu0 0.0
    %567 = vmatpush1.msra.mxu0 0.0
    %568 = vmatprep.subr.mxu0 0.0
    %569 = vmatpush1.msra.mxu0 0.0
    %570 = vmatprep.subr.mxu0 0.0
    %571 = vmatpush1.msra.mxu0 0.0
    %572 = vmatprep.subr.mxu0 0.0
    %573 = vmatpush1.msra.mxu0 0.0
    %574 = vmatprep.subr.mxu0 0.0
    %575 = vmatpush1.msra.mxu0 0.0
    %576 = vmatprep.subr.mxu0 0.0
    %577 = vmatpush1.msra.mxu0 0.0
    %578 = vmatprep.subr.mxu0 0.0
    %579 = vmatpush1.msra.mxu0 0.0
    %580 = vmatprep.subr.mxu0 0.0
    %581 = vmatpush1.msra.mxu0 0.0
    %582 = vmatprep.subr.mxu0 0.0
    %583 = vmatpush1.msra.mxu0 0.0
    %584 = vmatprep.subr.mxu0 0.0
    %585 = vmatpush1.msra.mxu0 0.0
    %586 = vmatprep.subr.mxu0 0.0
    %587 = vmatpush1.msra.mxu0 %v27
    %588 = vmatprep.subr.mxu0 0.0
    %589 = vmatpush1.msra.mxu0 %v26
    %590 = vmatprep.subr.mxu0 0.0
    %591 = vmatpush1.msra.mxu0 %v25
    %592 = vmatprep.subr.mxu0 0.0
    %593 = vmatpush1.msra.mxu0 %v24
    %594 = vmatprep.subr.mxu0 0.0
    %595 = vmatpush2.msra.mxu0 0.0
    %596 = vmatprep.subr.mxu0 0.0
    %597 = vmatpush2.msra.mxu0 0.0
    %598 = vmatprep.subr.mxu0 0.0
    %599 = vmatpush2.msra.mxu0 0.0
    %600 = vmatprep.subr.mxu0 0.0
    %601 = vmatpush2.msra.mxu0 0.0
    %602 = vmatprep.subr.mxu0 0.0
    %603 = vmatpush2.msra.mxu0 0.0
    %604 = vmatprep.subr.mxu0 0.0
    %605 = vmatpush2.msra.mxu0 0.0
    %606 = vmatprep.subr.mxu0 0.0
    %607 = vmatpush2.msra.mxu0 0.0
    %608 = vmatprep.subr.mxu0 0.0
    %609 = vmatpush2.msra.mxu0 0.0
    %610 = vmatprep.subr.mxu0 0.0
    %611 = vmatpush2.msra.mxu0 0.0
    %612 = vmatprep.subr.mxu0 0.0
    %613 = vmatpush2.msra.mxu0 0.0
    %614 = vmatprep.subr.mxu0 0.0
    %615 = vmatpush2.msra.mxu0 0.0
    %616 = vmatprep.subr.mxu0 0.0
    %617 = vmatpush2.msra.mxu0 0.0
    %618 = vmatprep.subr.mxu0 0.0
    %619 = vmatpush2.msra.mxu0 0.0
    %620 = vmatprep.subr.mxu0 0.0
    %621 = vmatpush2.msra.mxu0 0.0
    %622 = vmatprep.subr.mxu0 0.0
    %623 = vmatpush2.msra.mxu0 0.0
    %624 = vmatprep.subr.mxu0 0.0
    %625 = vmatpush2.msra.mxu0 0.0
    %626 = vmatprep.mubr.f32.mxu0 0.0
    %627 = vmatmul.mubr.f32.gmra.mxu0 %v455
    %v628 = vpop.f32.mrf.mxu0
    %v629 = vadd.f32 0.0, %v628
    %v630 = vpop.f32.mrf.mxu0
    %631 = vmatprep.mubr.f32.mxu0 0.0
    %632 = vmatmul.mubr.f32.gmra.mxu0 %v458
    %v633 = vpop.f32.mrf.mxu0
    %v634 = vadd.f32 0.0, %v633
    %v635 = vpop.f32.mrf.mxu0
    %636 = vmatprep.mubr.f32.mxu0 0.0
    %637 = vmatmul.mubr.f32.gmra.mxu0 %v461
    %v638 = vpop.f32.mrf.mxu0
    %v639 = vadd.f32 0.0, %v638
    %v640 = vpop.f32.mrf.mxu0
    %641 = vmatprep.mubr.f32.mxu0 0.0
    %642 = vmatmul.mubr.f32.gmra.mxu0 %v464
    %v643 = vpop.f32.mrf.mxu0
    %v644 = vadd.f32 0.0, %v643
    %v645 = vpop.f32.mrf.mxu0
    %646 = vmatprep.mubr.f32.mxu0 0.0
    %647 = vmatmul.mubr.f32.gmra.mxu0 %v467
    %v648 = vpop.f32.mrf.mxu0
    %v649 = vadd.f32 0.0, %v648
    %v650 = vpop.f32.mrf.mxu0
    %651 = vmatprep.mubr.f32.mxu0 0.0
    %652 = vmatmul.mubr.f32.gmra.mxu0 %v470
    %v653 = vpop.f32.mrf.mxu0
    %v654 = vadd.f32 0.0, %v653
    %v655 = vpop.f32.mrf.mxu0
    %656 = vmatprep.mubr.f32.mxu0 0.0
    %657 = vmatmul.mubr.f32.gmra.mxu0 %v473
    %v658 = vpop.f32.mrf.mxu0
    %v659 = vadd.f32 0.0, %v658
    %v660 = vpop.f32.mrf.mxu0
    %661 = vmatprep.mubr.f32.mxu0 0.0
    %662 = vmatmul.mubr.f32.gmra.mxu0 %v476
    %v663 = vpop.f32.mrf.mxu0
    %v664 = vadd.f32 0.0, %v663
    %v665 = vpop.f32.mrf.mxu0
    %666 = vmatprep.mubr.f32.mxu0 0.0
    %667 = vmatmul.mubr.f32.gmra.mxu0 %v479
    %v668 = vpop.f32.mrf.mxu0
    %v669 = vadd.f32 0.0, %v668
    %v670 = vpop.f32.mrf.mxu0
    %671 = vmatprep.mubr.f32.mxu0 0.0
    %672 = vmatmul.mubr.f32.gmra.mxu0 %v482
    %v673 = vpop.f32.mrf.mxu0
    %v674 = vadd.f32 0.0, %v673
    %v675 = vpop.f32.mrf.mxu0
    %676 = vmatprep.mubr.f32.mxu0 0.0
    %677 = vmatmul.mubr.f32.gmra.mxu0 %v485
    %v678 = vpop.f32.mrf.mxu0
    %v679 = vadd.f32 0.0, %v678
    %v680 = vpop.f32.mrf.mxu0
    %681 = vmatprep.mubr.f32.mxu0 0.0
    %682 = vmatmul.mubr.f32.gmra.mxu0 %v488
    %v683 = vpop.f32.mrf.mxu0
    %v684 = vadd.f32 0.0, %v683
    %v685 = vpop.f32.mrf.mxu0
    %686 = vmatprep.mubr.f32.mxu0 0.0
    %687 = vmatmul.mubr.f32.gmra.mxu0 %v491
    %v688 = vpop.f32.mrf.mxu0
    %v689 = vadd.f32 0.0, %v688
    %v690 = vpop.f32.mrf.mxu0
    %691 = vmatprep.mubr.f32.mxu0 0.0
    %692 = vmatmul.mubr.f32.gmra.mxu0 %v494
    %v693 = vpop.f32.mrf.mxu0
    %v694 = vadd.f32 0.0, %v693
    %v695 = vpop.f32.mrf.mxu0
    %696 = vmatprep.mubr.f32.mxu0 0.0
    %697 = vmatmul.mubr.f32.gmra.mxu0 %v497
    %v698 = vpop.f32.mrf.mxu0
    %v699 = vadd.f32 0.0, %v698
    %v700 = vpop.f32.mrf.mxu0
    %701 = vmatprep.mubr.f32.mxu0 0.0
    %702 = vmatmul.mubr.f32.gmra.mxu0 %v500
    %v703 = vpop.f32.mrf.mxu0
    %v704 = vadd.f32 0.0, %v703
    %v705 = vpop.f32.mrf.mxu0
    %706 = vmatprep.mubr.f32.mxu0 0.0
    %707 = vmatmul.mubr.f32.gmra.mxu0 %v503
    %v708 = vpop.f32.mrf.mxu0
    %v709 = vadd.f32 0.0, %v708
    %v710 = vpop.f32.mrf.mxu0
    %711 = vmatprep.mubr.f32.mxu0 0.0
    %712 = vmatmul.mubr.f32.gmra.mxu0 %v506
    %v713 = vpop.f32.mrf.mxu0
    %v714 = vadd.f32 0.0, %v713
    %v715 = vpop.f32.mrf.mxu0
    %716 = vmatprep.mubr.f32.mxu0 0.0
    %717 = vmatmul.mubr.f32.gmra.mxu0 %v509
    %v718 = vpop.f32.mrf.mxu0
    %v719 = vadd.f32 0.0, %v718
    %v720 = vpop.f32.mrf.mxu0
    %721 = vmatprep.mubr.f32.mxu0 0.0
    %722 = vmatmul.mubr.f32.gmra.mxu0 %v512
    %v723 = vpop.f32.mrf.mxu0
    %v724 = vadd.f32 0.0, %v723
    %v725 = vpop.f32.mrf.mxu0
    %726 = vmatprep.mubr.f32.mxu0 0.0
    %727 = vmatmul.mubr.f32.gmra.mxu0 %v515
    %v728 = vpop.f32.mrf.mxu0
    %v729 = vadd.f32 0.0, %v728
    %v730 = vpop.f32.mrf.mxu0
    %731 = vmatprep.mubr.f32.mxu0 0.0
    %732 = vmatmul.mubr.f32.gmra.mxu0 %v518
    %v733 = vpop.f32.mrf.mxu0
    %v734 = vadd.f32 0.0, %v733
    %v735 = vpop.f32.mrf.mxu0
    %736 = vmatprep.mubr.f32.mxu0 0.0
    %737 = vmatmul.mubr.f32.gmra.mxu0 %v521
    %v738 = vpop.f32.mrf.mxu0
    %v739 = vadd.f32 0.0, %v738
    %v740 = vpop.f32.mrf.mxu0
    %741 = vmatprep.mubr.f32.mxu0 0.0
    %742 = vmatmul.mubr.f32.gmra.mxu0 %v524
    %v743 = vpop.f32.mrf.mxu0
    %v744 = vadd.f32 0.0, %v743
    %v745 = vpop.f32.mrf.mxu0
    %746 = vmatprep.mubr.f32.mxu0 0.0
    %747 = vmatmul.mubr.f32.gmra.mxu0 %v527
    %v748 = vpop.f32.mrf.mxu0
    %v749 = vadd.f32 0.0, %v748
    %v750 = vpop.f32.mrf.mxu0
    %751 = vmatprep.mubr.f32.mxu0 0.0
    %752 = vmatmul.mubr.f32.gmra.mxu0 %v530
    %v753 = vpop.f32.mrf.mxu0
    %v754 = vadd.f32 0.0, %v753
    %v755 = vpop.f32.mrf.mxu0
    %756 = vmatprep.mubr.f32.mxu0 0.0
    %757 = vmatmul.mubr.f32.gmra.mxu0 %v533
    %v758 = vpop.f32.mrf.mxu0
    %v759 = vadd.f32 0.0, %v758
    %v760 = vpop.f32.mrf.mxu0
    %761 = vmatprep.mubr.f32.mxu0 0.0
    %762 = vmatmul.mubr.f32.gmra.mxu0 %v536
    %v763 = vpop.f32.mrf.mxu0
    %v764 = vadd.f32 0.0, %v763
    %v765 = vpop.f32.mrf.mxu0
    %766 = vmatprep.mubr.f32.mxu0 0.0
    %767 = vmatmul.mubr.f32.gmra.mxu0 %v539
    %v768 = vpop.f32.mrf.mxu0
    %v769 = vadd.f32 0.0, %v768
    %v770 = vpop.f32.mrf.mxu0
    %771 = vmatprep.mubr.f32.mxu0 0.0
    %772 = vmatmul.mubr.f32.gmra.mxu0 %v542
    %v773 = vpop.f32.mrf.mxu0
    %v774 = vadd.f32 0.0, %v773
    %v775 = vpop.f32.mrf.mxu0
    %776 = vmatprep.mubr.f32.mxu0 0.0
    %777 = vmatmul.mubr.f32.gmra.mxu0 %v545
    %v778 = vpop.f32.mrf.mxu0
    %v779 = vadd.f32 0.0, %v778
    %v780 = vpop.f32.mrf.mxu0
    %781 = vmatprep.mubr.f32.mxu0 0.0
    %782 = vmatmul.mubr.f32.gmra.mxu0 %v548
    %v783 = vpop.f32.mrf.mxu0
    %v784 = vadd.f32 0.0, %v783
    %v785 = vpop.f32.mrf.mxu0
    %786 = vmatprep.mubr.f32.mxu0 0.0
    %787 = vmatmul.mubr.f32.gmra.mxu0 %v551
    %v788 = vpop.f32.mrf.mxu0
    %v789 = vadd.f32 0.0, %v788
    %v790 = vpop.f32.mrf.mxu0
    %791 = vmatprep.mubr.f32.mxu0 0.0
    %792 = vmatmul.mubr.f32.gmra.mxu0 %v554
    %v793 = vpop.f32.mrf.mxu0
    %v794 = vadd.f32 0.0, %v793
    %v795 = vpop.f32.mrf.mxu0
    %796 = vmatprep.mubr.f32.mxu0 0.0
    %797 = vmatmul.mubr.f32.gmra.mxu0 %v557
    %v798 = vpop.f32.mrf.mxu0
    %v799 = vadd.f32 0.0, %v798
    %v800 = vpop.f32.mrf.mxu0
    %801 = vmatprep.mubr.f32.mxu0 0.0
    %802 = vmatmul.mubr.f32.gmra.mxu0 %v560
    %v803 = vpop.f32.mrf.mxu0
    %v804 = vadd.f32 0.0, %v803
    %v805 = vpop.f32.mrf.mxu0
    %806 = vdwg.mxu0
    %v807 = vmax.f32 %v240, %v629
    %v808 = vmax.f32 %v245, %v634
    %v809 = vmax.f32 %v250, %v639
    %v810 = vmax.f32 %v255, %v644
    %v811 = vmax.f32 %v260, %v649
    %v812 = vmax.f32 %v265, %v654
    %v813 = vmax.f32 %v270, %v659
    %v814 = vmax.f32 %v275, %v664
    %v815 = vmax.f32 %v280, %v669
    %v816 = vmax.f32 %v285, %v674
    %v817 = vmax.f32 %v290, %v679
    %v818 = vmax.f32 %v295, %v684
    %v819 = vmax.f32 %v300, %v689
    %v820 = vmax.f32 %v305, %v694
    %v821 = vmax.f32 %v310, %v699
    %v822 = vmax.f32 %v315, %v704
    %v823 = vmax.f32 %v320, %v709
    %v824 = vmax.f32 %v325, %v714
    %v825 = vmax.f32 %v330, %v719
    %v826 = vmax.f32 %v335, %v724
    %v827 = vmax.f32 %v340, %v729
    %v828 = vmax.f32 %v345, %v734
    %v829 = vmax.f32 %v350, %v739
    %v830 = vmax.f32 %v355, %v744
    %v831 = vmax.f32 %v360, %v749
    %v832 = vmax.f32 %v365, %v754
    %v833 = vmax.f32 %v370, %v759
    %v834 = vmax.f32 %v375, %v764
    %v835 = vmax.f32 %v380, %v769
    %v836 = vmax.f32 %v385, %v774
    %v837 = vmax.f32 %v390, %v779
    %v838 = vmax.f32 %v395, %v784
    %v839 = vmax.f32 %v400, %v789
    %v840 = vmax.f32 %v405, %v794
    %v841 = vmax.f32 %v410, %v799
    %v842 = vmax.f32 %v415, %v804
    %v843 = vld [vmem:[%s2] sm:$0xff]
    %v844 = vld [vmem:[%s2 + $0x8] sm:$0xff]
    %v845 = vld [vmem:[%s2 + $0x10] sm:$0xff]
    %v846 = vld [vmem:[%s2 + $0x18] sm:$0xff]
    %v847 = vld [vmem:[%s2 + $0x20] sm:$0xff]
    %v848 = vld [vmem:[%s2 + $0x28] sm:$0xff]
    %v849 = vld [vmem:[%s2 + $0x30] sm:$0xff]
    %v850 = vld [vmem:[%s2 + $0x38] sm:$0xff]
    %v851 = vld [vmem:[%s2 + $0x40] sm:$0xff]
    %v852 = vld [vmem:[%s2 + $0x48] sm:$0xff]
    %v853 = vld [vmem:[%s2 + $0x50] sm:$0xff]
    %v854 = vld [vmem:[%s2 + $0x58] sm:$0xff]
    %v855 = vld [vmem:[%s2 + $0x60] sm:$0xff]
    %v856 = vld [vmem:[%s2 + $0x68] sm:$0xff]
    %v857 = vld [vmem:[%s2 + $0x70] sm:$0xff]
    %v858 = vld [vmem:[%s2 + $0x78] sm:$0xff]
    %v859 = vld [vmem:[%s2 + $0x80] sm:$0xff]
    %v860 = vld [vmem:[%s2 + $0x88] sm:$0xff]
    %v861 = vld [vmem:[%s2 + $0x90] sm:$0xff]
    %v862 = vld [vmem:[%s2 + $0x98] sm:$0xff]
    %v863 = vld [vmem:[%s2 + $0xa0] sm:$0xff]
    %v864 = vld [vmem:[%s2 + $0xa8] sm:$0xff]
    %v865 = vld [vmem:[%s2 + $0xb0] sm:$0xff]
    %v866 = vld [vmem:[%s2 + $0xb8] sm:$0xff]
    %v867 = vld [vmem:[%s2 + $0xc0] sm:$0xff]
    %v868 = vld [vmem:[%s2 + $0xc8] sm:$0xff]
    %v869 = vld [vmem:[%s2 + $0xd0] sm:$0xff]
    %v870 = vld [vmem:[%s2 + $0xd8] sm:$0xff]
    %v871 = vld [vmem:[%s2 + $0xe0] sm:$0xff]
    %v872 = vld [vmem:[%s2 + $0xe8] sm:$0xff]
    %v873 = vld [vmem:[%s2 + $0xf0] sm:$0xff]
    %v874 = vld [vmem:[%s2 + $0xf8] sm:$0xff]
    %v875 = vld [vmem:[%s2 + $0x100] sm:$0xff]
    %v876 = vld [vmem:[%s2 + $0x108] sm:$0xff]
    %v877 = vld [vmem:[%s2 + $0x110] sm:$0xff]
    %v878 = vld [vmem:[%s2 + $0x118] sm:$0xff]
    %v880 = vsel %vm64, %v843, 0
    %v883 = vsel %vm64, %v844, 0
    %v886 = vsel %vm64, %v845, 0
    %v889 = vsel %vm64, %v846, 0
    %v892 = vsel %vm64, %v847, 0
    %v895 = vsel %vm64, %v848, 0
    %v898 = vsel %vm64, %v849, 0
    %v901 = vsel %vm64, %v850, 0
    %v904 = vsel %vm64, %v851, 0
    %v907 = vsel %vm64, %v852, 0
    %v910 = vsel %vm64, %v853, 0
    %v913 = vsel %vm64, %v854, 0
    %v916 = vsel %vm64, %v855, 0
    %v919 = vsel %vm64, %v856, 0
    %v922 = vsel %vm64, %v857, 0
    %v925 = vsel %vm64, %v858, 0
    %v928 = vsel %vm64, %v859, 0
    %v931 = vsel %vm64, %v860, 0
    %v934 = vsel %vm64, %v861, 0
    %v937 = vsel %vm64, %v862, 0
    %v940 = vsel %vm64, %v863, 0
    %v943 = vsel %vm64, %v864, 0
    %v946 = vsel %vm64, %v865, 0
    %v949 = vsel %vm64, %v866, 0
    %v952 = vsel %vm64, %v867, 0
    %v955 = vsel %vm64, %v868, 0
    %v958 = vsel %vm64, %v869, 0
    %v961 = vsel %vm64, %v870, 0
    %v964 = vsel %vm64, %v871, 0
    %v967 = vsel %vm64, %v872, 0
    %v970 = vsel %vm64, %v873, 0
    %v973 = vsel %vm64, %v874, 0
    %v976 = vsel %vm64, %v875, 0
    %v979 = vsel %vm64, %v876, 0
    %v982 = vsel %vm64, %v877, 0
    %v985 = vsel %vm64, %v878, 0
    %987 = vmatprep.subr.mxu0 0.0
    %988 = vmatpush1.msra.mxu0 0.0
    %989 = vmatprep.subr.mxu0 0.0
    %990 = vmatpush1.msra.mxu0 0.0
    %991 = vmatprep.subr.mxu0 0.0
    %992 = vmatpush1.msra.mxu0 0.0
    %993 = vmatprep.subr.mxu0 0.0
    %994 = vmatpush1.msra.mxu0 0.0
    %995 = vmatprep.subr.mxu0 0.0
    %996 = vmatpush1.msra.mxu0 0.0
    %997 = vmatprep.subr.mxu0 0.0
    %998 = vmatpush1.msra.mxu0 0.0
    %999 = vmatprep.subr.mxu0 0.0
    %1000 = vmatpush1.msra.mxu0 0.0
    %1001 = vmatprep.subr.mxu0 0.0
    %1002 = vmatpush1.msra.mxu0 0.0
    %1003 = vmatprep.subr.mxu0 0.0
    %1004 = vmatpush1.msra.mxu0 0.0
    %1005 = vmatprep.subr.mxu0 0.0
    %1006 = vmatpush1.msra.mxu0 0.0
    %1007 = vmatprep.subr.mxu0 0.0
    %1008 = vmatpush1.msra.mxu0 0.0
    %1009 = vmatprep.subr.mxu0 0.0
    %1010 = vmatpush1.msra.mxu0 0.0
    %1011 = vmatprep.subr.mxu0 0.0
    %1012 = vmatpush1.msra.mxu0 %v27
    %1013 = vmatprep.subr.mxu0 0.0
    %1014 = vmatpush1.msra.mxu0 %v26
    %1015 = vmatprep.subr.mxu0 0.0
    %1016 = vmatpush1.msra.mxu0 %v25
    %1017 = vmatprep.subr.mxu0 0.0
    %1018 = vmatpush1.msra.mxu0 %v24
    %1019 = vmatprep.subr.mxu0 0.0
    %1020 = vmatpush2.msra.mxu0 0.0
    %1021 = vmatprep.subr.mxu0 0.0
    %1022 = vmatpush2.msra.mxu0 0.0
    %1023 = vmatprep.subr.mxu0 0.0
    %1024 = vmatpush2.msra.mxu0 0.0
    %1025 = vmatprep.subr.mxu0 0.0
    %1026 = vmatpush2.msra.mxu0 0.0
    %1027 = vmatprep.subr.mxu0 0.0
    %1028 = vmatpush2.msra.mxu0 0.0
    %1029 = vmatprep.subr.mxu0 0.0
    %1030 = vmatpush2.msra.mxu0 0.0
    %1031 = vmatprep.subr.mxu0 0.0
    %1032 = vmatpush2.msra.mxu0 0.0
    %1033 = vmatprep.subr.mxu0 0.0
    %1034 = vmatpush2.msra.mxu0 0.0
    %1035 = vmatprep.subr.mxu0 0.0
    %1036 = vmatpush2.msra.mxu0 0.0
    %1037 = vmatprep.subr.mxu0 0.0
    %1038 = vmatpush2.msra.mxu0 0.0
    %1039 = vmatprep.subr.mxu0 0.0
    %1040 = vmatpush2.msra.mxu0 0.0
    %1041 = vmatprep.subr.mxu0 0.0
    %1042 = vmatpush2.msra.mxu0 0.0
    %1043 = vmatprep.subr.mxu0 0.0
    %1044 = vmatpush2.msra.mxu0 0.0
    %1045 = vmatprep.subr.mxu0 0.0
    %1046 = vmatpush2.msra.mxu0 0.0
    %1047 = vmatprep.subr.mxu0 0.0
    %1048 = vmatpush2.msra.mxu0 0.0
    %1049 = vmatprep.subr.mxu0 0.0
    %1050 = vmatpush2.msra.mxu0 0.0
    %1051 = vmatprep.mubr.f32.mxu0 0.0
    %1052 = vmatmul.mubr.f32.gmra.mxu0 %v880
    %v1053 = vpop.f32.mrf.mxu0
    %v1054 = vadd.f32 0.0, %v1053
    %v1055 = vpop.f32.mrf.mxu0
    %1056 = vmatprep.mubr.f32.mxu0 0.0
    %1057 = vmatmul.mubr.f32.gmra.mxu0 %v883
    %v1058 = vpop.f32.mrf.mxu0
    %v1059 = vadd.f32 0.0, %v1058
    %v1060 = vpop.f32.mrf.mxu0
    %1061 = vmatprep.mubr.f32.mxu0 0.0
    %1062 = vmatmul.mubr.f32.gmra.mxu0 %v886
    %v1063 = vpop.f32.mrf.mxu0
    %v1064 = vadd.f32 0.0, %v1063
    %v1065 = vpop.f32.mrf.mxu0
    %1066 = vmatprep.mubr.f32.mxu0 0.0
    %1067 = vmatmul.mubr.f32.gmra.mxu0 %v889
    %v1068 = vpop.f32.mrf.mxu0
    %v1069 = vadd.f32 0.0, %v1068
    %v1070 = vpop.f32.mrf.mxu0
    %1071 = vmatprep.mubr.f32.mxu0 0.0
    %1072 = vmatmul.mubr.f32.gmra.mxu0 %v892
    %v1073 = vpop.f32.mrf.mxu0
    %v1074 = vadd.f32 0.0, %v1073
    %v1075 = vpop.f32.mrf.mxu0
    %1076 = vmatprep.mubr.f32.mxu0 0.0
    %1077 = vmatmul.mubr.f32.gmra.mxu0 %v895
    %v1078 = vpop.f32.mrf.mxu0
    %v1079 = vadd.f32 0.0, %v1078
    %v1080 = vpop.f32.mrf.mxu0
    %1081 = vmatprep.mubr.f32.mxu0 0.0
    %1082 = vmatmul.mubr.f32.gmra.mxu0 %v898
    %v1083 = vpop.f32.mrf.mxu0
    %v1084 = vadd.f32 0.0, %v1083
    %v1085 = vpop.f32.mrf.mxu0
    %1086 = vmatprep.mubr.f32.mxu0 0.0
    %1087 = vmatmul.mubr.f32.gmra.mxu0 %v901
    %v1088 = vpop.f32.mrf.mxu0
    %v1089 = vadd.f32 0.0, %v1088
    %v1090 = vpop.f32.mrf.mxu0
    %1091 = vmatprep.mubr.f32.mxu0 0.0
    %1092 = vmatmul.mubr.f32.gmra.mxu0 %v904
    %v1093 = vpop.f32.mrf.mxu0
    %v1094 = vadd.f32 0.0, %v1093
    %v1095 = vpop.f32.mrf.mxu0
    %1096 = vmatprep.mubr.f32.mxu0 0.0
    %1097 = vmatmul.mubr.f32.gmra.mxu0 %v907
    %v1098 = vpop.f32.mrf.mxu0
    %v1099 = vadd.f32 0.0, %v1098
    %v1100 = vpop.f32.mrf.mxu0
    %1101 = vmatprep.mubr.f32.mxu0 0.0
    %1102 = vmatmul.mubr.f32.gmra.mxu0 %v910
    %v1103 = vpop.f32.mrf.mxu0
    %v1104 = vadd.f32 0.0, %v1103
    %v1105 = vpop.f32.mrf.mxu0
    %1106 = vmatprep.mubr.f32.mxu0 0.0
    %1107 = vmatmul.mubr.f32.gmra.mxu0 %v913
    %v1108 = vpop.f32.mrf.mxu0
    %v1109 = vadd.f32 0.0, %v1108
    %v1110 = vpop.f32.mrf.mxu0
    %1111 = vmatprep.mubr.f32.mxu0 0.0
    %1112 = vmatmul.mubr.f32.gmra.mxu0 %v916
    %v1113 = vpop.f32.mrf.mxu0
    %v1114 = vadd.f32 0.0, %v1113
    %v1115 = vpop.f32.mrf.mxu0
    %1116 = vmatprep.mubr.f32.mxu0 0.0
    %1117 = vmatmul.mubr.f32.gmra.mxu0 %v919
    %v1118 = vpop.f32.mrf.mxu0
    %v1119 = vadd.f32 0.0, %v1118
    %v1120 = vpop.f32.mrf.mxu0
    %1121 = vmatprep.mubr.f32.mxu0 0.0
    %1122 = vmatmul.mubr.f32.gmra.mxu0 %v922
    %v1123 = vpop.f32.mrf.mxu0
    %v1124 = vadd.f32 0.0, %v1123
    %v1125 = vpop.f32.mrf.mxu0
    %1126 = vmatprep.mubr.f32.mxu0 0.0
    %1127 = vmatmul.mubr.f32.gmra.mxu0 %v925
    %v1128 = vpop.f32.mrf.mxu0
    %v1129 = vadd.f32 0.0, %v1128
    %v1130 = vpop.f32.mrf.mxu0
    %1131 = vmatprep.mubr.f32.mxu0 0.0
    %1132 = vmatmul.mubr.f32.gmra.mxu0 %v928
    %v1133 = vpop.f32.mrf.mxu0
    %v1134 = vadd.f32 0.0, %v1133
    %v1135 = vpop.f32.mrf.mxu0
    %1136 = vmatprep.mubr.f32.mxu0 0.0
    %1137 = vmatmul.mubr.f32.gmra.mxu0 %v931
    %v1138 = vpop.f32.mrf.mxu0
    %v1139 = vadd.f32 0.0, %v1138
    %v1140 = vpop.f32.mrf.mxu0
    %1141 = vmatprep.mubr.f32.mxu0 0.0
    %1142 = vmatmul.mubr.f32.gmra.mxu0 %v934
    %v1143 = vpop.f32.mrf.mxu0
    %v1144 = vadd.f32 0.0, %v1143
    %v1145 = vpop.f32.mrf.mxu0
    %1146 = vmatprep.mubr.f32.mxu0 0.0
    %1147 = vmatmul.mubr.f32.gmra.mxu0 %v937
    %v1148 = vpop.f32.mrf.mxu0
    %v1149 = vadd.f32 0.0, %v1148
    %v1150 = vpop.f32.mrf.mxu0
    %1151 = vmatprep.mubr.f32.mxu0 0.0
    %1152 = vmatmul.mubr.f32.gmra.mxu0 %v940
    %v1153 = vpop.f32.mrf.mxu0
    %v1154 = vadd.f32 0.0, %v1153
    %v1155 = vpop.f32.mrf.mxu0
    %1156 = vmatprep.mubr.f32.mxu0 0.0
    %1157 = vmatmul.mubr.f32.gmra.mxu0 %v943
    %v1158 = vpop.f32.mrf.mxu0
    %v1159 = vadd.f32 0.0, %v1158
    %v1160 = vpop.f32.mrf.mxu0
    %1161 = vmatprep.mubr.f32.mxu0 0.0
    %1162 = vmatmul.mubr.f32.gmra.mxu0 %v946
    %v1163 = vpop.f32.mrf.mxu0
    %v1164 = vadd.f32 0.0, %v1163
    %v1165 = vpop.f32.mrf.mxu0
    %1166 = vmatprep.mubr.f32.mxu0 0.0
    %1167 = vmatmul.mubr.f32.gmra.mxu0 %v949
    %v1168 = vpop.f32.mrf.mxu0
    %v1169 = vadd.f32 0.0, %v1168
    %v1170 = vpop.f32.mrf.mxu0
    %1171 = vmatprep.mubr.f32.mxu0 0.0
    %1172 = vmatmul.mubr.f32.gmra.mxu0 %v952
    %v1173 = vpop.f32.mrf.mxu0
    %v1174 = vadd.f32 0.0, %v1173
    %v1175 = vpop.f32.mrf.mxu0
    %1176 = vmatprep.mubr.f32.mxu0 0.0
    %1177 = vmatmul.mubr.f32.gmra.mxu0 %v955
    %v1178 = vpop.f32.mrf.mxu0
    %v1179 = vadd.f32 0.0, %v1178
    %v1180 = vpop.f32.mrf.mxu0
    %1181 = vmatprep.mubr.f32.mxu0 0.0
    %1182 = vmatmul.mubr.f32.gmra.mxu0 %v958
    %v1183 = vpop.f32.mrf.mxu0
    %v1184 = vadd.f32 0.0, %v1183
    %v1185 = vpop.f32.mrf.mxu0
    %1186 = vmatprep.mubr.f32.mxu0 0.0
    %1187 = vmatmul.mubr.f32.gmra.mxu0 %v961
    %v1188 = vpop.f32.mrf.mxu0
    %v1189 = vadd.f32 0.0, %v1188
    %v1190 = vpop.f32.mrf.mxu0
    %1191 = vmatprep.mubr.f32.mxu0 0.0
    %1192 = vmatmul.mubr.f32.gmra.mxu0 %v964
    %v1193 = vpop.f32.mrf.mxu0
    %v1194 = vadd.f32 0.0, %v1193
    %v1195 = vpop.f32.mrf.mxu0
    %1196 = vmatprep.mubr.f32.mxu0 0.0
    %1197 = vmatmul.mubr.f32.gmra.mxu0 %v967
    %v1198 = vpop.f32.mrf.mxu0
    %v1199 = vadd.f32 0.0, %v1198
    %v1200 = vpop.f32.mrf.mxu0
    %1201 = vmatprep.mubr.f32.mxu0 0.0
    %1202 = vmatmul.mubr.f32.gmra.mxu0 %v970
    %v1203 = vpop.f32.mrf.mxu0
    %v1204 = vadd.f32 0.0, %v1203
    %v1205 = vpop.f32.mrf.mxu0
    %1206 = vmatprep.mubr.f32.mxu0 0.0
    %1207 = vmatmul.mubr.f32.gmra.mxu0 %v973
    %v1208 = vpop.f32.mrf.mxu0
    %v1209 = vadd.f32 0.0, %v1208
    %v1210 = vpop.f32.mrf.mxu0
    %1211 = vmatprep.mubr.f32.mxu0 0.0
    %1212 = vmatmul.mubr.f32.gmra.mxu0 %v976
    %v1213 = vpop.f32.mrf.mxu0
    %v1214 = vadd.f32 0.0, %v1213
    %v1215 = vpop.f32.mrf.mxu0
    %1216 = vmatprep.mubr.f32.mxu0 0.0
    %1217 = vmatmul.mubr.f32.gmra.mxu0 %v979
    %v1218 = vpop.f32.mrf.mxu0
    %v1219 = vadd.f32 0.0, %v1218
    %v1220 = vpop.f32.mrf.mxu0
    %1221 = vmatprep.mubr.f32.mxu0 0.0
    %1222 = vmatmul.mubr.f32.gmra.mxu0 %v982
    %v1223 = vpop.f32.mrf.mxu0
    %v1224 = vadd.f32 0.0, %v1223
    %v1225 = vpop.f32.mrf.mxu0
    %1226 = vmatprep.mubr.f32.mxu0 0.0
    %1227 = vmatmul.mubr.f32.gmra.mxu0 %v985
    %v1228 = vpop.f32.mrf.mxu0
    %v1229 = vadd.f32 0.0, %v1228
    %v1230 = vpop.f32.mrf.mxu0
    %1231 = vdwg.mxu0
    %v1232 = vmax.f32 %v807, %v1054
    %v1233 = vmax.f32 %v808, %v1059
    %v1234 = vmax.f32 %v809, %v1064
    %v1235 = vmax.f32 %v810, %v1069
    %v1236 = vmax.f32 %v811, %v1074
    %v1237 = vmax.f32 %v812, %v1079
    %v1238 = vmax.f32 %v813, %v1084
    %v1239 = vmax.f32 %v814, %v1089
    %v1240 = vmax.f32 %v815, %v1094
    %v1241 = vmax.f32 %v816, %v1099
    %v1242 = vmax.f32 %v817, %v1104
    %v1243 = vmax.f32 %v818, %v1109
    %v1244 = vmax.f32 %v819, %v1114
    %v1245 = vmax.f32 %v820, %v1119
    %v1246 = vmax.f32 %v821, %v1124
    %v1247 = vmax.f32 %v822, %v1129
    %v1248 = vmax.f32 %v823, %v1134
    %v1249 = vmax.f32 %v824, %v1139
    %v1250 = vmax.f32 %v825, %v1144
    %v1251 = vmax.f32 %v826, %v1149
    %v1252 = vmax.f32 %v827, %v1154
    %v1253 = vmax.f32 %v828, %v1159
    %v1254 = vmax.f32 %v829, %v1164
    %v1255 = vmax.f32 %v830, %v1169
    %v1256 = vmax.f32 %v831, %v1174
    %v1257 = vmax.f32 %v832, %v1179
    %v1258 = vmax.f32 %v833, %v1184
    %v1259 = vmax.f32 %v834, %v1189
    %v1260 = vmax.f32 %v835, %v1194
    %v1261 = vmax.f32 %v836, %v1199
    %v1262 = vmax.f32 %v837, %v1204
    %v1263 = vmax.f32 %v838, %v1209
    %v1264 = vmax.f32 %v839, %v1214
    %v1265 = vmax.f32 %v840, %v1219
    %v1266 = vmax.f32 %v841, %v1224
    %v1267 = vmax.f32 %v842, %v1229
    %v1268 = vld [vmem:[%s3] sm:$0xff]
    %v1269 = vld [vmem:[%s3 + $0x8] sm:$0xff]
    %v1270 = vld [vmem:[%s3 + $0x10] sm:$0xff]
    %v1271 = vld [vmem:[%s3 + $0x18] sm:$0xff]
    %v1272 = vld [vmem:[%s3 + $0x20] sm:$0xff]
    %v1273 = vld [vmem:[%s3 + $0x28] sm:$0xff]
    %v1274 = vld [vmem:[%s3 + $0x30] sm:$0xff]
    %v1275 = vld [vmem:[%s3 + $0x38] sm:$0xff]
    %v1276 = vld [vmem:[%s3 + $0x40] sm:$0xff]
    %v1277 = vld [vmem:[%s3 + $0x48] sm:$0xff]
    %v1278 = vld [vmem:[%s3 + $0x50] sm:$0xff]
    %v1279 = vld [vmem:[%s3 + $0x58] sm:$0xff]
    %v1280 = vld [vmem:[%s3 + $0x60] sm:$0xff]
    %v1281 = vld [vmem:[%s3 + $0x68] sm:$0xff]
    %v1282 = vld [vmem:[%s3 + $0x70] sm:$0xff]
    %v1283 = vld [vmem:[%s3 + $0x78] sm:$0xff]
    %v1284 = vld [vmem:[%s3 + $0x80] sm:$0xff]
    %v1285 = vld [vmem:[%s3 + $0x88] sm:$0xff]
    %v1286 = vld [vmem:[%s3 + $0x90] sm:$0xff]
    %v1287 = vld [vmem:[%s3 + $0x98] sm:$0xff]
    %v1288 = vld [vmem:[%s3 + $0xa0] sm:$0xff]
    %v1289 = vld [vmem:[%s3 + $0xa8] sm:$0xff]
    %v1290 = vld [vmem:[%s3 + $0xb0] sm:$0xff]
    %v1291 = vld [vmem:[%s3 + $0xb8] sm:$0xff]
    %v1292 = vld [vmem:[%s3 + $0xc0] sm:$0xff]
    %v1293 = vld [vmem:[%s3 + $0xc8] sm:$0xff]
    %v1294 = vld [vmem:[%s3 + $0xd0] sm:$0xff]
    %v1295 = vld [vmem:[%s3 + $0xd8] sm:$0xff]
    %v1296 = vld [vmem:[%s3 + $0xe0] sm:$0xff]
    %v1297 = vld [vmem:[%s3 + $0xe8] sm:$0xff]
    %v1298 = vld [vmem:[%s3 + $0xf0] sm:$0xff]
    %v1299 = vld [vmem:[%s3 + $0xf8] sm:$0xff]
    %v1300 = vld [vmem:[%s3 + $0x100] sm:$0xff]
    %v1301 = vld [vmem:[%s3 + $0x108] sm:$0xff]
    %v1302 = vld [vmem:[%s3 + $0x110] sm:$0xff]
    %v1303 = vld [vmem:[%s3 + $0x118] sm:$0xff]
    %v1305 = vsel %vm64, %v1268, 0
    %v1308 = vsel %vm64, %v1269, 0
    %v1311 = vsel %vm64, %v1270, 0
    %v1314 = vsel %vm64, %v1271, 0
    %v1317 = vsel %vm64, %v1272, 0
    %v1320 = vsel %vm64, %v1273, 0
    %v1323 = vsel %vm64, %v1274, 0
    %v1326 = vsel %vm64, %v1275, 0
    %v1329 = vsel %vm64, %v1276, 0
    %v1332 = vsel %vm64, %v1277, 0
    %v1335 = vsel %vm64, %v1278, 0
    %v1338 = vsel %vm64, %v1279, 0
    %v1341 = vsel %vm64, %v1280, 0
    %v1344 = vsel %vm64, %v1281, 0
    %v1347 = vsel %vm64, %v1282, 0
    %v1350 = vsel %vm64, %v1283, 0
    %v1353 = vsel %vm64, %v1284, 0
    %v1356 = vsel %vm64, %v1285, 0
    %v1359 = vsel %vm64, %v1286, 0
    %v1362 = vsel %vm64, %v1287, 0
    %v1365 = vsel %vm64, %v1288, 0
    %v1368 = vsel %vm64, %v1289, 0
    %v1371 = vsel %vm64, %v1290, 0
    %v1374 = vsel %vm64, %v1291, 0
    %v1377 = vsel %vm64, %v1292, 0
    %v1380 = vsel %vm64, %v1293, 0
    %v1383 = vsel %vm64, %v1294, 0
    %v1386 = vsel %vm64, %v1295, 0
    %v1389 = vsel %vm64, %v1296, 0
    %v1392 = vsel %vm64, %v1297, 0
    %v1395 = vsel %vm64, %v1298, 0
    %v1398 = vsel %vm64, %v1299, 0
    %v1401 = vsel %vm64, %v1300, 0
    %v1404 = vsel %vm64, %v1301, 0
    %v1407 = vsel %vm64, %v1302, 0
    %v1410 = vsel %vm64, %v1303, 0
    %1412 = vmatprep.subr.mxu0 0.0
    %1413 = vmatpush1.msra.mxu0 0.0
    %1414 = vmatprep.subr.mxu0 0.0
    %1415 = vmatpush1.msra.mxu0 0.0
    %1416 = vmatprep.subr.mxu0 0.0
    %1417 = vmatpush1.msra.mxu0 0.0
    %1418 = vmatprep.subr.mxu0 0.0
    %1419 = vmatpush1.msra.mxu0 0.0
    %1420 = vmatprep.subr.mxu0 0.0
    %1421 = vmatpush1.msra.mxu0 0.0
    %1422 = vmatprep.subr.mxu0 0.0
    %1423 = vmatpush1.msra.mxu0 0.0
    %1424 = vmatprep.subr.mxu0 0.0
    %1425 = vmatpush1.msra.mxu0 0.0
    %1426 = vmatprep.subr.mxu0 0.0
    %1427 = vmatpush1.msra.mxu0 0.0
    %1428 = vmatprep.subr.mxu0 0.0
    %1429 = vmatpush1.msra.mxu0 0.0
    %1430 = vmatprep.subr.mxu0 0.0
    %1431 = vmatpush1.msra.mxu0 0.0
    %1432 = vmatprep.subr.mxu0 0.0
    %1433 = vmatpush1.msra.mxu0 0.0
    %1434 = vmatprep.subr.mxu0 0.0
    %1435 = vmatpush1.msra.mxu0 0.0
    %1436 = vmatprep.subr.mxu0 0.0
    %1437 = vmatpush1.msra.mxu0 %v27
    %1438 = vmatprep.subr.mxu0 0.0
    %1439 = vmatpush1.msra.mxu0 %v26
    %1440 = vmatprep.subr.mxu0 0.0
    %1441 = vmatpush1.msra.mxu0 %v25
    %1442 = vmatprep.subr.mxu0 0.0
    %1443 = vmatpush1.msra.mxu0 %v24
    %1444 = vmatprep.subr.mxu0 0.0
    %1445 = vmatpush2.msra.mxu0 0.0
    %1446 = vmatprep.subr.mxu0 0.0
    %1447 = vmatpush2.msra.mxu0 0.0
    %1448 = vmatprep.subr.mxu0 0.0
    %1449 = vmatpush2.msra.mxu0 0.0
    %1450 = vmatprep.subr.mxu0 0.0
    %1451 = vmatpush2.msra.mxu0 0.0
    %1452 = vmatprep.subr.mxu0 0.0
    %1453 = vmatpush2.msra.mxu0 0.0
    %1454 = vmatprep.subr.mxu0 0.0
    %1455 = vmatpush2.msra.mxu0 0.0
    %1456 = vmatprep.subr.mxu0 0.0
    %1457 = vmatpush2.msra.mxu0 0.0
    %1458 = vmatprep.subr.mxu0 0.0
    %1459 = vmatpush2.msra.mxu0 0.0
    %1460 = vmatprep.subr.mxu0 0.0
    %1461 = vmatpush2.msra.mxu0 0.0
    %1462 = vmatprep.subr.mxu0 0.0
    %1463 = vmatpush2.msra.mxu0 0.0
    %1464 = vmatprep.subr.mxu0 0.0
    %1465 = vmatpush2.msra.mxu0 0.0
    %1466 = vmatprep.subr.mxu0 0.0
    %1467 = vmatpush2.msra.mxu0 0.0
    %1468 = vmatprep.subr.mxu0 0.0
    %1469 = vmatpush2.msra.mxu0 0.0
    %1470 = vmatprep.subr.mxu0 0.0
    %1471 = vmatpush2.msra.mxu0 0.0
    %1472 = vmatprep.subr.mxu0 0.0
    %1473 = vmatpush2.msra.mxu0 0.0
    %1474 = vmatprep.subr.mxu0 0.0
    %1475 = vmatpush2.msra.mxu0 0.0
    %1476 = vmatprep.mubr.f32.mxu0 0.0
    %1477 = vmatmul.mubr.f32.gmra.mxu0 %v1305
    %v1478 = vpop.f32.mrf.mxu0
    %v1479 = vadd.f32 0.0, %v1478
    %v1480 = vpop.f32.mrf.mxu0
    %1481 = vmatprep.mubr.f32.mxu0 0.0
    %1482 = vmatmul.mubr.f32.gmra.mxu0 %v1308
    %v1483 = vpop.f32.mrf.mxu0
    %v1484 = vadd.f32 0.0, %v1483
    %v1485 = vpop.f32.mrf.mxu0
    %1486 = vmatprep.mubr.f32.mxu0 0.0
    %1487 = vmatmul.mubr.f32.gmra.mxu0 %v1311
    %v1488 = vpop.f32.mrf.mxu0
    %v1489 = vadd.f32 0.0, %v1488
    %v1490 = vpop.f32.mrf.mxu0
    %1491 = vmatprep.mubr.f32.mxu0 0.0
    %1492 = vmatmul.mubr.f32.gmra.mxu0 %v1314
    %v1493 = vpop.f32.mrf.mxu0
    %v1494 = vadd.f32 0.0, %v1493
    %v1495 = vpop.f32.mrf.mxu0
    %1496 = vmatprep.mubr.f32.mxu0 0.0
    %1497 = vmatmul.mubr.f32.gmra.mxu0 %v1317
    %v1498 = vpop.f32.mrf.mxu0
    %v1499 = vadd.f32 0.0, %v1498
    %v1500 = vpop.f32.mrf.mxu0
    %1501 = vmatprep.mubr.f32.mxu0 0.0
    %1502 = vmatmul.mubr.f32.gmra.mxu0 %v1320
    %v1503 = vpop.f32.mrf.mxu0
    %v1504 = vadd.f32 0.0, %v1503
    %v1505 = vpop.f32.mrf.mxu0
    %1506 = vmatprep.mubr.f32.mxu0 0.0
    %1507 = vmatmul.mubr.f32.gmra.mxu0 %v1323
    %v1508 = vpop.f32.mrf.mxu0
    %v1509 = vadd.f32 0.0, %v1508
    %v1510 = vpop.f32.mrf.mxu0
    %1511 = vmatprep.mubr.f32.mxu0 0.0
    %1512 = vmatmul.mubr.f32.gmra.mxu0 %v1326
    %v1513 = vpop.f32.mrf.mxu0
    %v1514 = vadd.f32 0.0, %v1513
    %v1515 = vpop.f32.mrf.mxu0
    %1516 = vmatprep.mubr.f32.mxu0 0.0
    %1517 = vmatmul.mubr.f32.gmra.mxu0 %v1329
    %v1518 = vpop.f32.mrf.mxu0
    %v1519 = vadd.f32 0.0, %v1518
    %v1520 = vpop.f32.mrf.mxu0
    %1521 = vmatprep.mubr.f32.mxu0 0.0
    %1522 = vmatmul.mubr.f32.gmra.mxu0 %v1332
    %v1523 = vpop.f32.mrf.mxu0
    %v1524 = vadd.f32 0.0, %v1523
    %v1525 = vpop.f32.mrf.mxu0
    %1526 = vmatprep.mubr.f32.mxu0 0.0
    %1527 = vmatmul.mubr.f32.gmra.mxu0 %v1335
    %v1528 = vpop.f32.mrf.mxu0
    %v1529 = vadd.f32 0.0, %v1528
    %v1530 = vpop.f32.mrf.mxu0
    %1531 = vmatprep.mubr.f32.mxu0 0.0
    %1532 = vmatmul.mubr.f32.gmra.mxu0 %v1338
    %v1533 = vpop.f32.mrf.mxu0
    %v1534 = vadd.f32 0.0, %v1533
    %v1535 = vpop.f32.mrf.mxu0
    %1536 = vmatprep.mubr.f32.mxu0 0.0
    %1537 = vmatmul.mubr.f32.gmra.mxu0 %v1341
    %v1538 = vpop.f32.mrf.mxu0
    %v1539 = vadd.f32 0.0, %v1538
    %v1540 = vpop.f32.mrf.mxu0
    %1541 = vmatprep.mubr.f32.mxu0 0.0
    %1542 = vmatmul.mubr.f32.gmra.mxu0 %v1344
    %v1543 = vpop.f32.mrf.mxu0
    %v1544 = vadd.f32 0.0, %v1543
    %v1545 = vpop.f32.mrf.mxu0
    %1546 = vmatprep.mubr.f32.mxu0 0.0
    %1547 = vmatmul.mubr.f32.gmra.mxu0 %v1347
    %v1548 = vpop.f32.mrf.mxu0
    %v1549 = vadd.f32 0.0, %v1548
    %v1550 = vpop.f32.mrf.mxu0
    %1551 = vmatprep.mubr.f32.mxu0 0.0
    %1552 = vmatmul.mubr.f32.gmra.mxu0 %v1350
    %v1553 = vpop.f32.mrf.mxu0
    %v1554 = vadd.f32 0.0, %v1553
    %v1555 = vpop.f32.mrf.mxu0
    %1556 = vmatprep.mubr.f32.mxu0 0.0
    %1557 = vmatmul.mubr.f32.gmra.mxu0 %v1353
    %v1558 = vpop.f32.mrf.mxu0
    %v1559 = vadd.f32 0.0, %v1558
    %v1560 = vpop.f32.mrf.mxu0
    %1561 = vmatprep.mubr.f32.mxu0 0.0
    %1562 = vmatmul.mubr.f32.gmra.mxu0 %v1356
    %v1563 = vpop.f32.mrf.mxu0
    %v1564 = vadd.f32 0.0, %v1563
    %v1565 = vpop.f32.mrf.mxu0
    %1566 = vmatprep.mubr.f32.mxu0 0.0
    %1567 = vmatmul.mubr.f32.gmra.mxu0 %v1359
    %v1568 = vpop.f32.mrf.mxu0
    %v1569 = vadd.f32 0.0, %v1568
    %v1570 = vpop.f32.mrf.mxu0
    %1571 = vmatprep.mubr.f32.mxu0 0.0
    %1572 = vmatmul.mubr.f32.gmra.mxu0 %v1362
    %v1573 = vpop.f32.mrf.mxu0
    %v1574 = vadd.f32 0.0, %v1573
    %v1575 = vpop.f32.mrf.mxu0
    %1576 = vmatprep.mubr.f32.mxu0 0.0
    %1577 = vmatmul.mubr.f32.gmra.mxu0 %v1365
    %v1578 = vpop.f32.mrf.mxu0
    %v1579 = vadd.f32 0.0, %v1578
    %v1580 = vpop.f32.mrf.mxu0
    %1581 = vmatprep.mubr.f32.mxu0 0.0
    %1582 = vmatmul.mubr.f32.gmra.mxu0 %v1368
    %v1583 = vpop.f32.mrf.mxu0
    %v1584 = vadd.f32 0.0, %v1583
    %v1585 = vpop.f32.mrf.mxu0
    %1586 = vmatprep.mubr.f32.mxu0 0.0
    %1587 = vmatmul.mubr.f32.gmra.mxu0 %v1371
    %v1588 = vpop.f32.mrf.mxu0
    %v1589 = vadd.f32 0.0, %v1588
    %v1590 = vpop.f32.mrf.mxu0
    %1591 = vmatprep.mubr.f32.mxu0 0.0
    %1592 = vmatmul.mubr.f32.gmra.mxu0 %v1374
    %v1593 = vpop.f32.mrf.mxu0
    %v1594 = vadd.f32 0.0, %v1593
    %v1595 = vpop.f32.mrf.mxu0
    %1596 = vmatprep.mubr.f32.mxu0 0.0
    %1597 = vmatmul.mubr.f32.gmra.mxu0 %v1377
    %v1598 = vpop.f32.mrf.mxu0
    %v1599 = vadd.f32 0.0, %v1598
    %v1600 = vpop.f32.mrf.mxu0
    %1601 = vmatprep.mubr.f32.mxu0 0.0
    %1602 = vmatmul.mubr.f32.gmra.mxu0 %v1380
    %v1603 = vpop.f32.mrf.mxu0
    %v1604 = vadd.f32 0.0, %v1603
    %v1605 = vpop.f32.mrf.mxu0
    %1606 = vmatprep.mubr.f32.mxu0 0.0
    %1607 = vmatmul.mubr.f32.gmra.mxu0 %v1383
    %v1608 = vpop.f32.mrf.mxu0
    %v1609 = vadd.f32 0.0, %v1608
    %v1610 = vpop.f32.mrf.mxu0
    %1611 = vmatprep.mubr.f32.mxu0 0.0
    %1612 = vmatmul.mubr.f32.gmra.mxu0 %v1386
    %v1613 = vpop.f32.mrf.mxu0
    %v1614 = vadd.f32 0.0, %v1613
    %v1615 = vpop.f32.mrf.mxu0
    %1616 = vmatprep.mubr.f32.mxu0 0.0
    %1617 = vmatmul.mubr.f32.gmra.mxu0 %v1389
    %v1618 = vpop.f32.mrf.mxu0
    %v1619 = vadd.f32 0.0, %v1618
    %v1620 = vpop.f32.mrf.mxu0
    %1621 = vmatprep.mubr.f32.mxu0 0.0
    %1622 = vmatmul.mubr.f32.gmra.mxu0 %v1392
    %v1623 = vpop.f32.mrf.mxu0
    %v1624 = vadd.f32 0.0, %v1623
    %v1625 = vpop.f32.mrf.mxu0
    %1626 = vmatprep.mubr.f32.mxu0 0.0
    %1627 = vmatmul.mubr.f32.gmra.mxu0 %v1395
    %v1628 = vpop.f32.mrf.mxu0
    %v1629 = vadd.f32 0.0, %v1628
    %v1630 = vpop.f32.mrf.mxu0
    %1631 = vmatprep.mubr.f32.mxu0 0.0
    %1632 = vmatmul.mubr.f32.gmra.mxu0 %v1398
    %v1633 = vpop.f32.mrf.mxu0
    %v1634 = vadd.f32 0.0, %v1633
    %v1635 = vpop.f32.mrf.mxu0
    %1636 = vmatprep.mubr.f32.mxu0 0.0
    %1637 = vmatmul.mubr.f32.gmra.mxu0 %v1401
    %v1638 = vpop.f32.mrf.mxu0
    %v1639 = vadd.f32 0.0, %v1638
    %v1640 = vpop.f32.mrf.mxu0
    %1641 = vmatprep.mubr.f32.mxu0 0.0
    %1642 = vmatmul.mubr.f32.gmra.mxu0 %v1404
    %v1643 = vpop.f32.mrf.mxu0
    %v1644 = vadd.f32 0.0, %v1643
    %v1645 = vpop.f32.mrf.mxu0
    %1646 = vmatprep.mubr.f32.mxu0 0.0
    %1647 = vmatmul.mubr.f32.gmra.mxu0 %v1407
    %v1648 = vpop.f32.mrf.mxu0
    %v1649 = vadd.f32 0.0, %v1648
    %v1650 = vpop.f32.mrf.mxu0
    %1651 = vmatprep.mubr.f32.mxu0 0.0
    %1652 = vmatmul.mubr.f32.gmra.mxu0 %v1410
    %v1653 = vpop.f32.mrf.mxu0
    %v1654 = vadd.f32 0.0, %v1653
    %v1655 = vpop.f32.mrf.mxu0
    %1656 = vdwg.mxu0
    %v1657 = vmax.f32 %v1232, %v1479
    %v1658 = vmax.f32 %v1233, %v1484
    %v1659 = vmax.f32 %v1234, %v1489
    %v1660 = vmax.f32 %v1235, %v1494
    %v1661 = vmax.f32 %v1236, %v1499
    %v1662 = vmax.f32 %v1237, %v1504
    %v1663 = vmax.f32 %v1238, %v1509
    %v1664 = vmax.f32 %v1239, %v1514
    %v1665 = vmax.f32 %v1240, %v1519
    %v1666 = vmax.f32 %v1241, %v1524
    %v1667 = vmax.f32 %v1242, %v1529
    %v1668 = vmax.f32 %v1243, %v1534
    %v1669 = vmax.f32 %v1244, %v1539
    %v1670 = vmax.f32 %v1245, %v1544
    %v1671 = vmax.f32 %v1246, %v1549
    %v1672 = vmax.f32 %v1247, %v1554
    %v1673 = vmax.f32 %v1248, %v1559
    %v1674 = vmax.f32 %v1249, %v1564
    %v1675 = vmax.f32 %v1250, %v1569
    %v1676 = vmax.f32 %v1251, %v1574
    %v1677 = vmax.f32 %v1252, %v1579
    %v1678 = vmax.f32 %v1253, %v1584
    %v1679 = vmax.f32 %v1254, %v1589
    %v1680 = vmax.f32 %v1255, %v1594
    %v1681 = vmax.f32 %v1256, %v1599
    %v1682 = vmax.f32 %v1257, %v1604
    %v1683 = vmax.f32 %v1258, %v1609
    %v1684 = vmax.f32 %v1259, %v1614
    %v1685 = vmax.f32 %v1260, %v1619
    %v1686 = vmax.f32 %v1261, %v1624
    %v1687 = vmax.f32 %v1262, %v1629
    %v1688 = vmax.f32 %v1263, %v1634
    %v1689 = vmax.f32 %v1264, %v1639
    %v1690 = vmax.f32 %v1265, %v1644
    %v1691 = vmax.f32 %v1266, %v1649
    %v1692 = vmax.f32 %v1267, %v1654
    %v1693 = vld [vmem:[%s5] sm:$0x1]
    %v1695 = vlaneseq
    %v1696 = vshrl.u32 %v1695, 7
    %v1697 = vsub.s32 0, %v1696
    %v1698 = vrot.slane %v1693, %v1697
    %v1700 = vadd.f32 %v1657, %v1698
    %v1701 = vadd.f32 %v1658, %v1698
    %v1702 = vadd.f32 %v1659, %v1698
    %v1703 = vadd.f32 %v1660, %v1698
    %v1704 = vadd.f32 %v1661, %v1698
    %v1705 = vadd.f32 %v1662, %v1698
    %v1706 = vadd.f32 %v1663, %v1698
    %v1707 = vadd.f32 %v1664, %v1698
    %v1708 = vadd.f32 %v1665, %v1698
    %v1709 = vadd.f32 %v1666, %v1698
    %v1710 = vadd.f32 %v1667, %v1698
    %v1711 = vadd.f32 %v1668, %v1698
    %v1712 = vadd.f32 %v1669, %v1698
    %v1713 = vadd.f32 %v1670, %v1698
    %v1714 = vadd.f32 %v1671, %v1698
    %v1715 = vadd.f32 %v1672, %v1698
    %v1716 = vadd.f32 %v1673, %v1698
    %v1717 = vadd.f32 %v1674, %v1698
    %v1718 = vadd.f32 %v1675, %v1698
    %v1719 = vadd.f32 %v1676, %v1698
    %v1720 = vadd.f32 %v1677, %v1698
    %v1721 = vadd.f32 %v1678, %v1698
    %v1722 = vadd.f32 %v1679, %v1698
    %v1723 = vadd.f32 %v1680, %v1698
    %v1724 = vadd.f32 %v1681, %v1698
    %v1725 = vadd.f32 %v1682, %v1698
    %v1726 = vadd.f32 %v1683, %v1698
    %v1727 = vadd.f32 %v1684, %v1698
    %v1728 = vadd.f32 %v1685, %v1698
    %v1729 = vadd.f32 %v1686, %v1698
    %v1730 = vadd.f32 %v1687, %v1698
    %v1731 = vadd.f32 %v1688, %v1698
    %v1732 = vadd.f32 %v1689, %v1698
    %v1733 = vadd.f32 %v1690, %v1698
    %v1734 = vadd.f32 %v1691, %v1698
    %v1735 = vadd.f32 %v1692, %v1698
    %v1736 = vmax.f32 %v1700, 0.0
    %v1737 = vmax.f32 %v1701, 0.0
    %v1738 = vmax.f32 %v1702, 0.0
    %v1739 = vmax.f32 %v1703, 0.0
    %v1740 = vmax.f32 %v1704, 0.0
    %v1741 = vmax.f32 %v1705, 0.0
    %v1742 = vmax.f32 %v1706, 0.0
    %v1743 = vmax.f32 %v1707, 0.0
    %v1744 = vmax.f32 %v1708, 0.0
    %v1745 = vmax.f32 %v1709, 0.0
    %v1746 = vmax.f32 %v1710, 0.0
    %v1747 = vmax.f32 %v1711, 0.0
    %v1748 = vmax.f32 %v1712, 0.0
    %v1749 = vmax.f32 %v1713, 0.0
    %v1750 = vmax.f32 %v1714, 0.0
    %v1751 = vmax.f32 %v1715, 0.0
    %v1752 = vmax.f32 %v1716, 0.0
    %v1753 = vmax.f32 %v1717, 0.0
    %v1754 = vmax.f32 %v1718, 0.0
    %v1755 = vmax.f32 %v1719, 0.0
    %v1756 = vmax.f32 %v1720, 0.0
    %v1757 = vmax.f32 %v1721, 0.0
    %v1758 = vmax.f32 %v1722, 0.0
    %v1759 = vmax.f32 %v1723, 0.0
    %v1760 = vmax.f32 %v1724, 0.0
    %v1761 = vmax.f32 %v1725, 0.0
    %v1762 = vmax.f32 %v1726, 0.0
    %v1763 = vmax.f32 %v1727, 0.0
    %v1764 = vmax.f32 %v1728, 0.0
    %v1765 = vmax.f32 %v1729, 0.0
    %v1766 = vmax.f32 %v1730, 0.0
    %v1767 = vmax.f32 %v1731, 0.0
    %v1768 = vmax.f32 %v1732, 0.0
    %v1769 = vmax.f32 %v1733, 0.0
    %v1770 = vmax.f32 %v1734, 0.0
    %v1771 = vmax.f32 %v1735, 0.0
    %1772 = vst [vmem:[#allocation2] sm:$0xff] %v1736
    %1773 = vst [vmem:[#allocation2 + $0x8] sm:$0xff] %v1737
    %1774 = vst [vmem:[#allocation2 + $0x10] sm:$0xff] %v1738
    %1775 = vst [vmem:[#allocation2 + $0x18] sm:$0xff] %v1739
    %1776 = vst [vmem:[#allocation2 + $0x20] sm:$0xff] %v1740
    %1777 = vst [vmem:[#allocation2 + $0x28] sm:$0xff] %v1741
    %1778 = vst [vmem:[#allocation2 + $0x30] sm:$0xff] %v1742
    %1779 = vst [vmem:[#allocation2 + $0x38] sm:$0xff] %v1743
    %1780 = vst [vmem:[#allocation2 + $0x40] sm:$0xff] %v1744
    %1781 = vst [vmem:[#allocation2 + $0x48] sm:$0xff] %v1745
    %1782 = vst [vmem:[#allocation2 + $0x50] sm:$0xff] %v1746
    %1783 = vst [vmem:[#allocation2 + $0x58] sm:$0xff] %v1747
    %1784 = vst [vmem:[#allocation2 + $0x60] sm:$0xff] %v1748
    %1785 = vst [vmem:[#allocation2 + $0x68] sm:$0xff] %v1749
    %1786 = vst [vmem:[#allocation2 + $0x70] sm:$0xff] %v1750
    %1787 = vst [vmem:[#allocation2 + $0x78] sm:$0xff] %v1751
    %1788 = vst [vmem:[#allocation2 + $0x80] sm:$0xff] %v1752
    %1789 = vst [vmem:[#allocation2 + $0x88] sm:$0xff] %v1753
    %1790 = vst [vmem:[#allocation2 + $0x90] sm:$0xff] %v1754
    %1791 = vst [vmem:[#allocation2 + $0x98] sm:$0xff] %v1755
    %1792 = vst [vmem:[#allocation2 + $0xa0] sm:$0xff] %v1756
    %1793 = vst [vmem:[#allocation2 + $0xa8] sm:$0xff] %v1757
    %1794 = vst [vmem:[#allocation2 + $0xb0] sm:$0xff] %v1758
    %1795 = vst [vmem:[#allocation2 + $0xb8] sm:$0xff] %v1759
    %1796 = vst [vmem:[#allocation2 + $0xc0] sm:$0xff] %v1760
    %1797 = vst [vmem:[#allocation2 + $0xc8] sm:$0xff] %v1761
    %1798 = vst [vmem:[#allocation2 + $0xd0] sm:$0xff] %v1762
    %1799 = vst [vmem:[#allocation2 + $0xd8] sm:$0xff] %v1763
    %1800 = vst [vmem:[#allocation2 + $0xe0] sm:$0xff] %v1764
    %1801 = vst [vmem:[#allocation2 + $0xe8] sm:$0xff] %v1765
    %1802 = vst [vmem:[#allocation2 + $0xf0] sm:$0xff] %v1766
    %1803 = vst [vmem:[#allocation2 + $0xf8] sm:$0xff] %v1767
    %1804 = vst [vmem:[#allocation2 + $0x100] sm:$0xff] %v1768
    %1805 = vst [vmem:[#allocation2 + $0x108] sm:$0xff] %v1769
    %1806 = vst [vmem:[#allocation2 + $0x110] sm:$0xff] %v1770
    %1807 = vst [vmem:[#allocation2 + $0x118] sm:$0xff] %v1771
    // Predicated region
    $region26: #{tpu_custom_call.1} parent=1 // pred_check
      _
    $region27: #{tpu_custom_call.1} parent=1 // pred_check_branch
      %1809 = sbr.rel (0) target = $region29
    $region28: #{tpu_custom_call.1} parent=1 // pred_region
      %s1811 = ssub.s32 4608, 4608
      %1812 = vsyncadd [#allocation3], %s1811
      %s1813 = sshll.u32 [#allocation2], 4
      %s1814 = int_to_ptr.vmem [resolvable:$true] %s1813
      %1819 = dma.vmem_to_hbm [thread:$0]  %s1814, 4608, %s6, [#allocation3], 128, 128, 8
    $region29: #{tpu_custom_call.1} parent=1 // pred_fallthru
      _
    // Predicated region
    $region30: #{tpu_custom_call.1} parent=1 // pred_check
      _
    $region31: #{tpu_custom_call.1} parent=1 // pred_check_branch
      %1821 = sbr.rel (0) target = $region33
    $region32: #{tpu_custom_call.1} parent=1 // pred_region
      %1822 = dma.done [#allocation3], 4608
    $region33: #{tpu_custom_call.1} parent=1 // pred_fallthru
      _
    %1823 = vsyncpa [#allocation3], 1

</llo_original>
